<compile_context>
chip_gen: v7x
topology: tpu7x:2x2x1
jax: 0.10.0
libtpu: 0.0.40
codegen_flags: <defaults>
</compile_context>

<pallas_src>
import functools

import jax
import jax.numpy as jnp
from jax.experimental import pallas as pl
from jax.experimental.pallas import tpu as pltpu


def posterior_encoder_kernel(
    # scalar prefetch (SMEM)
    len_ref,                 # (B,) int32  sequence lengths
    dil_ref,                 # (L,) int32  per-layer dilation
    # inputs
    x_ref,                   # (1, T, Cin) bf16   channel-last, current batch
    noise_ref,               # (1, T, out) f32
    bias_ref,                # (1, 1, 4, H) f32   rows: [gate_tanh | gate_sig | res | skip]
    wpre_ref, bpre_ref,      # (Cin, H) bf16, (1, H) f32            (resident)
    win_t_ref, win_s_ref,    # (L*K, H, H) bf16 each                (resident)
    wrs_r_ref, wrs_s_ref,    # (L, H, H) bf16 each                  (resident)
    wpm_ref, bpm_ref,        # (H, out) bf16, (1, out) f32          (resident)
    wps_ref, bps_ref,        # (H, out) bf16, (1, out) f32          (resident)
    # output
    out_ref,                 # (1, T, 3*out) f32  packed [ mean | logs | z ]
    # VMEM scratch (persists across the layer grid axis)
    padbuf,                  # (T + 2*pad_max, H) f32  residual h + zero halo
    skip_scr,                # (T, H) f32  skip accumulator
    mask_h,                  # (T, H) f32  hoisted broadcast sequence mask
    mask_1,                  # (T, 1) f32  sequence mask
    *, hidden, out_channels, kernel_size, num_layers, pad_max,
):
    b = pl.program_id(0)
    l = pl.program_id(1)
    H = hidden
    K = kernel_size
    L = num_layers
    T = skip_scr.shape[0]
    half = (K - 1) // 2

    # ---------------- per-batch init (first layer step) ---------------------
    @pl.when(l == 0)
    def _init():
        length = len_ref[b]
        t_idx = jax.lax.broadcasted_iota(jnp.int32, (T, 1), 0)
        m1 = (t_idx < length).astype(jnp.float32)                     # (T, 1)
        mask_1[...] = m1
        mask_h[...] = jnp.broadcast_to(m1, (T, H))                    # hoisted

        # pre 1x1 conv: h = (x @ Wpre + b) * mask, written into padbuf center
        h = (jnp.dot(x_ref[0], wpre_ref[...],
                     preferred_element_type=jnp.float32)
             + bpre_ref[...]) * m1
        padbuf[pl.ds(pad_max, T), :] = h
        skip_scr[...] = jnp.zeros((T, H), jnp.float32)

        # zero only the halo rows; the center is the live residual buffer
        zeros_halo = jnp.zeros((pad_max, H), jnp.float32)
        padbuf[pl.ds(0, pad_max), :] = zeros_halo
        padbuf[pl.ds(pad_max + T, pad_max), :] = zeros_halo

    # ---------------- WN layer l ---------------------------------------------
    bias = bias_ref[0, 0]                                             # (4, H) f32
    dil = dil_ref[l]

    # dilated "same" conv: K accumulating (T,H)@(H,H) matmuls reading the
    # zero-halo residual buffer directly (no tap staging copies)
    acc_t = jnp.zeros((T, H), jnp.float32)
    acc_s = jnp.zeros((T, H), jnp.float32)
    for j in range(K):                                                # tiny static tap loop
        start = pad_max + (j - half) * dil
        tap = padbuf[pl.ds(start, T), :].astype(jnp.bfloat16)
        idx = l * K + j
        acc_t = acc_t + jnp.dot(tap, win_t_ref[idx],
                                preferred_element_type=jnp.float32)
        acc_s = acc_s + jnp.dot(tap, win_s_ref[idx],
                                preferred_element_type=jnp.float32)
    acc_t = acc_t + bias[0:1, :]
    acc_s = acc_s + bias[1:2, :]

    # fused_add_tanh_sigmoid_multiply; sigmoid via tanh identity (1 EUP push)
    acts = (jnp.tanh(acc_t) * (0.5 * jnp.tanh(0.5 * acc_s) + 0.5)).astype(jnp.bfloat16)

    # res / skip 1x1 convs with lane-0 aligned halves.  The last layer's res
    # weights & bias are zero, so its residual update is a no-op (keeps the
    # per-layer body uniform and branch-free under the dynamic layer index).
    res = jnp.dot(acts, wrs_r_ref[l], preferred_element_type=jnp.float32) + bias[2:3, :]
    skp = jnp.dot(acts, wrs_s_ref[l], preferred_element_type=jnp.float32) + bias[3:4, :]
    padbuf[pl.ds(pad_max, T), :] = (padbuf[pl.ds(pad_max, T), :] + res) * mask_h[...]
    skip_scr[...] = skip_scr[...] + skp

    # ---------------- epilogue (last layer): proj + sample -------------------
    @pl.when(l == L - 1)
    def _final():
        m1 = mask_1[...]
        wn_out = (skip_scr[...] * mask_h[...]).astype(jnp.bfloat16)   # (T, H)
        mean = (jnp.dot(wn_out, wpm_ref[...], preferred_element_type=jnp.float32)
                + bpm_ref[...]) * m1                                  # (T, out)
        logs = (jnp.dot(wn_out, wps_ref[...], preferred_element_type=jnp.float32)
                + bps_ref[...]) * m1                                  # (T, out)
        z = (mean + noise_ref[0] * jnp.exp(logs)) * m1
        # single lane-dense store of the packed slab [ mean | logs | z ]
        out_ref[0] = jnp.concatenate([mean, logs, z], axis=-1)


def posterior_encoder(x, x_lengths, g, noise, params, *, out_channels, hidden,
                      kernel_size, dilation_rate, num_layers):
    """Forward pass of PosteriorEncoder.

    x: [B, Cin, T] (PyTorch layout), x_lengths: [B], g: [B, Ccond, 1],
    noise: [B, T, out_channels] iid N(0,1) (channel-last; equivalent to
    torch.randn_like(mean) because the noise is iid).
    Returns (z, mean, log_scale, x_mask) in PyTorch [B, C, T] layout.
    """
    B, Cin, T = x.shape
    H, K, L = hidden, kernel_size, num_layers
    pad_true = (dilation_rate ** (L - 1)) * (K - 1) // 2
    pad_max = max(8, ((pad_true + 7) // 8) * 8)           # sublane-aligned halo

    (wpre, bpre, wcond, bcond, win, b_in, wrs, brs, wproj, bproj) = params

    # channel-last bf16 spec input (the kernel matmuls are bf16 x bf16 -> f32)
    x_cl = jnp.transpose(x, (0, 2, 1)).astype(jnp.bfloat16)           # (B, T, Cin)

    # Fold the conditioning projection (g has time-length 1) into a
    # precomputed per-(b, l) gate bias; pack it together with the per-layer
    # res/skip biases into one small streamed operand (4 rows of H).
    g_vec = g[:, :, 0].astype(jnp.float32)                            # (B, Ccond)
    gate_bias = (jnp.einsum('bc,lch->blh', g_vec, wcond.astype(jnp.float32))
                 + (bcond[:, 0] + b_in[:, 0])[None])                  # (B, L, 2H)
    brs_b = jnp.broadcast_to(brs[:, 0][None], (B, L, 2 * H))          # (B, L, 2H)
    bias_pack = jnp.stack(
        [gate_bias[..., :H], gate_bias[..., H:], brs_b[..., :H], brs_b[..., H:]],
        axis=2).astype(jnp.float32)                                   # (B, L, 4, H)

    # split weights into lane-0-aligned halves; conv taps along leading axis
    win4 = win.reshape(L, K, H, 2 * H)
    win_t = win4[..., :H].reshape(L * K, H, H)                        # tanh half
    win_s = win4[..., H:].reshape(L * K, H, H)                        # sigmoid half
    wrs_r = wrs[:, :, :H]                                             # res half
    wrs_s = wrs[:, :, H:]                                             # skip half
    wpm, wps = wproj[:, :out_channels], wproj[:, out_channels:]
    bpm, bps = bproj[:, :out_channels], bproj[:, out_channels:]

    dil_tab = jnp.asarray([dilation_rate ** i for i in range(L)], jnp.int32)

    kern = functools.partial(
        posterior_encoder_kernel, hidden=H, out_channels=out_channels,
        kernel_size=K, num_layers=L, pad_max=pad_max)

    def batch_spec(trailing):
        nd = len(trailing)
        return pl.BlockSpec((1,) + tuple(trailing),
                            lambda b_, l_, lens, dil, _nd=nd: (b_,) + (0,) * _nd)

    def full_spec(arr):
        nd = arr.ndim
        return pl.BlockSpec(arr.shape,
                            lambda b_, l_, lens, dil, _nd=nd: (0,) * _nd)

    bias_spec = pl.BlockSpec((1, 1, 4, H),
                             lambda b_, l_, lens, dil: (b_, l_, 0, 0))

    in_specs = [
        batch_spec((T, Cin)),                    # x
        batch_spec((T, out_channels)),           # noise
        bias_spec,                               # packed per-(b,l) biases
        full_spec(wpre), full_spec(bpre),        # pre conv        (resident)
        full_spec(win_t), full_spec(win_s),      # dilated conv    (resident)
        full_spec(wrs_r), full_spec(wrs_s),      # res / skip      (resident)
        full_spec(wpm), full_spec(bpm),          # proj mean half  (resident)
        full_spec(wps), full_spec(bps),          # proj logs half  (resident)
    ]
    out_spec = pl.BlockSpec((1, T, 3 * out_channels),
                            lambda b_, l_, lens, dil: (b_, 0, 0))

    slab = pl.pallas_call(
        kern,
        out_shape=jax.ShapeDtypeStruct((B, T, 3 * out_channels), jnp.float32),
        grid_spec=pltpu.PrefetchScalarGridSpec(
            num_scalar_prefetch=2,
            grid=(B, L),                               # batch outer, layers inner
            in_specs=in_specs,
            out_specs=out_spec,
            scratch_shapes=[
                pltpu.VMEM((T + 2 * pad_max, H), jnp.float32),    # residual + halo
                pltpu.VMEM((T, H), jnp.float32),                  # skip acc
                pltpu.VMEM((T, H), jnp.float32),                  # mask (T,H)
                pltpu.VMEM((T, 1), jnp.float32),                  # mask (T,1)
            ],
        ),
        compiler_params=pltpu.CompilerParams(
            dimension_semantics=("parallel", "arbitrary"),        # megacore on v7x
            vmem_limit_bytes=48 * 1024 * 1024,
        ),
    )(x_lengths.astype(jnp.int32), dil_tab, x_cl, noise, bias_pack,
      wpre, bpre, win_t, win_s, wrs_r, wrs_s, wpm, bpm, wps, bps)

    # unpack the slab; one transpose back to PyTorch [B, C, T] layout
    mean = jnp.transpose(slab[:, :, :out_channels], (0, 2, 1))
    logs = jnp.transpose(slab[:, :, out_channels:2 * out_channels], (0, 2, 1))
    z = jnp.transpose(slab[:, :, 2 * out_channels:], (0, 2, 1))
    x_mask = (jnp.arange(T)[None, :] < x_lengths[:, None]).astype(x.dtype)[:, None, :]
    return z, mean, logs, x_mask


def init_params(key, in_channels, out_channels, hidden, kernel_size,
                dilation_rate, num_layers, cond_channels):
    """Synthetic weights (weight-norm in eval mode == plain weights).

    Matmul weights are stored in bf16 (MXU-native, half the DMA/VMEM footprint);
    biases stay f32 and are added to the f32 accumulators.
    """
    H, K, L = hidden, kernel_size, num_layers
    s = 0.1
    wdt = jnp.bfloat16
    keys = jax.random.split(key, 9)

    wpre = (jax.random.normal(keys[0], (in_channels, H), jnp.float32) * s).astype(wdt)
    bpre = jax.random.normal(keys[1], (1, H), jnp.float32) * s
    wcond = (jax.random.normal(keys[2], (L, cond_channels, 2 * H), jnp.float32) * s).astype(wdt)
    bcond = jax.random.normal(keys[3], (L, 1, 2 * H), jnp.float32) * s
    # in_layers: per layer the K taps are stacked along rows -> (K*H, 2H)
    win = (jax.random.normal(keys[4], (L, K * H, 2 * H), jnp.float32) * s).astype(wdt)
    b_in = jax.random.normal(keys[5], (L, 1, 2 * H), jnp.float32) * s

    # res_skip layers: i < L-1 -> (H, 2H) [res | skip]; the last layer is
    # skip-only and is stored in the upper-half columns with a zero res half so
    # the per-layer kernel body stays uniform (the res update becomes a no-op).
    kk = jax.random.split(keys[6], 2 * L)
    wrs_list, brs_list = [], []
    for i in range(L):
        if i < L - 1:
            w = jax.random.normal(kk[2 * i], (H, 2 * H), jnp.float32) * s
            bvec = jax.random.normal(kk[2 * i + 1], (1, 2 * H), jnp.float32) * s
        else:
            w_skip = jax.random.normal(kk[2 * i], (H, H), jnp.float32) * s
            w = jnp.concatenate([jnp.zeros((H, H), jnp.float32), w_skip], axis=1)
            b_skip = jax.random.normal(kk[2 * i + 1], (1, H), jnp.float32) * s
            bvec = jnp.concatenate([jnp.zeros((1, H), jnp.float32), b_skip], axis=1)
        wrs_list.append(w)
        brs_list.append(bvec)
    wrs = jnp.stack(wrs_list, axis=0).astype(wdt)       # (L, H, 2H)
    brs = jnp.stack(brs_list, axis=0)                   # (L, 1, 2H)

    wproj = (jax.random.normal(keys[7], (H, 2 * out_channels), jnp.float32) * s).astype(wdt)
    bproj = jax.random.normal(keys[8], (1, 2 * out_channels), jnp.float32) * s
    return (wpre, bpre, wcond, bcond, win, b_in, wrs, brs, wproj, bproj)


if __name__ == "__main__":
    # small config consistent with PosteriorEncoder.__init__
    B, T = 2, 16
    in_channels = 4
    out_channels = 4
    hidden = 32
    kernel_size = 5
    dilation_rate = 2
    num_layers = 3
    cond_channels = 8

    key = jax.random.PRNGKey(0)
    k_x, k_g, k_n, k_p = jax.random.split(key, 4)

    x = jax.random.normal(k_x, (B, in_channels, T), jnp.float32)
    x_lengths = jnp.array([16, 11], jnp.int32)
    g = jax.random.normal(k_g, (B, cond_channels, 1), jnp.float32)
    # torch.randn_like(mean) equivalent: iid normal, generated channel-last so
    # no layout transpose is needed on the way into the kernel.
    noise = jax.random.normal(k_n, (B, T, out_channels), jnp.float32)

    params = init_params(k_p, in_channels, out_channels, hidden, kernel_size,
                         dilation_rate, num_layers, cond_channels)

    z, mean, log_scale, x_mask = posterior_encoder(
        x, x_lengths, g, noise, params,
        out_channels=out_channels, hidden=hidden, kernel_size=kernel_size,
        dilation_rate=dilation_rate, num_layers=num_layers)

    jax.block_until_ready((z, mean, log_scale, x_mask))
    assert z.shape == (B, out_channels, T)
    assert mean.shape == (B, out_channels, T)
    assert log_scale.shape == (B, out_channels, T)
    assert x_mask.shape == (B, 1, T)
    print("KERNEL_OK")
</pallas_src>

<mosaic_0001>
module attributes {stable_mosaic.version = 11 : i64} {
  func.func @posterior_encoder_kernel(%arg0: i32, %arg1: i32, %arg2: memref<2xi32, #tpu.memory_space<smem>>, %arg3: memref<3xi32, #tpu.memory_space<smem>>, %arg4: memref<1x16x4xbf16, #tpu.memory_space<vmem>>, %arg5: memref<1x16x4xf32, #tpu.memory_space<vmem>>, %arg6: memref<1x1x4x32xf32, #tpu.memory_space<vmem>>, %arg7: memref<4x32xbf16, #tpu.memory_space<vmem>>, %arg8: memref<1x32xf32, #tpu.memory_space<vmem>>, %arg9: memref<15x32x32xbf16, #tpu.memory_space<vmem>>, %arg10: memref<15x32x32xbf16, #tpu.memory_space<vmem>>, %arg11: memref<3x32x32xbf16, #tpu.memory_space<vmem>>, %arg12: memref<3x32x32xbf16, #tpu.memory_space<vmem>>, %arg13: memref<32x4xbf16, #tpu.memory_space<vmem>>, %arg14: memref<1x4xf32, #tpu.memory_space<vmem>>, %arg15: memref<32x4xbf16, #tpu.memory_space<vmem>>, %arg16: memref<1x4xf32, #tpu.memory_space<vmem>>, %arg17: memref<1x16x12xf32, #tpu.memory_space<vmem>>, %arg18: memref<32x32xf32, #tpu.memory_space<vmem>>, %arg19: memref<16x32xf32, #tpu.memory_space<vmem>>, %arg20: memref<16x32xf32, #tpu.memory_space<vmem>>, %arg21: memref<16x1xf32, #tpu.memory_space<vmem>>) attributes {dimension_semantics = [#tpu.dimension_semantics<parallel>, #tpu.dimension_semantics<arbitrary>], iteration_bounds = array<i64: 2, 3>, scalar_prefetch = 2 : i64, scratch_operands = 4 : i64, tpu.core_type = #tpu.core_type<tc>, window_params = [{transform_indices = @transform_0, window_bounds = array<i64: 1, 16, 4>}, {transform_indices = @transform_1, window_bounds = array<i64: 1, 16, 4>}, {transform_indices = @transform_2, window_bounds = array<i64: 1, 1, 4, 32>}, {pipeline_mode = #tpu.pipeline_mode<synchronous>, transform_indices = @transform_3, window_bounds = array<i64: 4, 32>}, {pipeline_mode = #tpu.pipeline_mode<synchronous>, transform_indices = @transform_4, window_bounds = array<i64: 1, 32>}, {pipeline_mode = #tpu.pipeline_mode<synchronous>, transform_indices = @transform_5, window_bounds = array<i64: 15, 32, 32>}, {pipeline_mode = #tpu.pipeline_mode<synchronous>, transform_indices = @transform_6, window_bounds = array<i64: 15, 32, 32>}, {pipeline_mode = #tpu.pipeline_mode<synchronous>, transform_indices = @transform_7, window_bounds = array<i64: 3, 32, 32>}, {pipeline_mode = #tpu.pipeline_mode<synchronous>, transform_indices = @transform_8, window_bounds = array<i64: 3, 32, 32>}, {pipeline_mode = #tpu.pipeline_mode<synchronous>, transform_indices = @transform_9, window_bounds = array<i64: 32, 4>}, {pipeline_mode = #tpu.pipeline_mode<synchronous>, transform_indices = @transform_10, window_bounds = array<i64: 1, 4>}, {pipeline_mode = #tpu.pipeline_mode<synchronous>, transform_indices = @transform_11, window_bounds = array<i64: 32, 4>}, {pipeline_mode = #tpu.pipeline_mode<synchronous>, transform_indices = @transform_12, window_bounds = array<i64: 1, 4>}, {transform_indices = @transform_13, window_bounds = array<i64: 1, 16, 12>}]} {
    %c0_i32 = arith.constant 0 : i32
    %0 = arith.cmpi eq, %arg1, %c0_i32 : i32
    %1 = arith.extui %0 : i1 to i32
    %c0_i32_0 = arith.constant 0 : i32
    %2 = arith.cmpi ne, %1, %c0_i32_0 : i32
    scf.if %2 {
      %135 = arith.index_cast %arg0 : i32 to index
      %136 = memref.load %arg2[%135] : memref<2xi32, #tpu.memory_space<smem>>
      %137 = tpu.iota {dimensions = array<i32: 0>} : vector<16x1xi32>
      %138 = vector.broadcast %136 : i32 to vector<16x1xi32>
      %139 = arith.cmpi slt, %137, %138 : vector<16x1xi32>
      %140 = arith.extui %139 : vector<16x1xi1> to vector<16x1xi32>
      %141 = arith.sitofp %140 : vector<16x1xi32> to vector<16x1xf32>
      %c0_72 = arith.constant 0 : index
      %c0_73 = arith.constant 0 : index
      %142 = vector.load %arg21[%c0_72, %c0_73] : memref<16x1xf32, #tpu.memory_space<vmem>>, vector<16x1xf32>
      tpu.vector_store %arg21[%c0_72, %c0_73], %141 {strides = array<i32>} : memref<16x1xf32, #tpu.memory_space<vmem>>, vector<16x1xf32>,
      %143 = vector.shape_cast %141 : vector<16x1xf32> to vector<16x1xf32>
      %144 = vector.broadcast %143 : vector<16x1xf32> to vector<16x32xf32>
      %c0_74 = arith.constant 0 : index
      %c0_75 = arith.constant 0 : index
      %145 = vector.load %arg20[%c0_74, %c0_75] : memref<16x32xf32, #tpu.memory_space<vmem>>, vector<16x32xf32>
      tpu.vector_store %arg20[%c0_74, %c0_75], %144 {strides = array<i32>} : memref<16x32xf32, #tpu.memory_space<vmem>>, vector<16x32xf32>,
      %c0_76 = arith.constant 0 : index
      %c0_77 = arith.constant 0 : index
      %c0_78 = arith.constant 0 : index
      %146 = vector.load %arg4[%c0_76, %c0_77, %c0_78] : memref<1x16x4xbf16, #tpu.memory_space<vmem>>, vector<1x16x4xbf16>
      %147 = vector.shape_cast %146 : vector<1x16x4xbf16> to vector<16x4xbf16>
      %c0_79 = arith.constant 0 : index
      %c0_80 = arith.constant 0 : index
      %148 = vector.load %arg7[%c0_79, %c0_80] : memref<4x32xbf16, #tpu.memory_space<vmem>>, vector<4x32xbf16>
      %cst_81 = arith.constant dense<0.000000e+00> : vector<16x32xf32>
      %149 = tpu.matmul %147, %148, %cst_81 {dimension_numbers = #tpu.dot_dimension_numbers<[1], [0], [0], [1], [0, 0, 1, 1], [], []>} : vector<16x4xbf16>, vector<4x32xbf16>, vector<16x32xf32> -> vector<16x32xf32>
      %c0_82 = arith.constant 0 : index
      %c0_83 = arith.constant 0 : index
      %150 = vector.load %arg8[%c0_82, %c0_83] : memref<1x32xf32, #tpu.memory_space<vmem>>, vector<1x32xf32>
      %151 = vector.broadcast %150 : vector<1x32xf32> to vector<16x32xf32>
      %152 = arith.addf %149, %151 : vector<16x32xf32>
      %153 = vector.broadcast %141 : vector<16x1xf32> to vector<16x32xf32>
      %154 = arith.mulf %152, %153 : vector<16x32xf32>
      %c8_84 = arith.constant 8 : index
      %c0_85 = arith.constant 0 : index
      %155 = vector.load %arg18[%c8_84, %c0_85] : memref<32x32xf32, #tpu.memory_space<vmem>>, vector<16x32xf32>
      tpu.vector_store %arg18[%c8_84, %c0_85], %154 {strides = array<i32>} : memref<32x32xf32, #tpu.memory_space<vmem>>, vector<16x32xf32>,
      %cst_86 = arith.constant 0.000000e+00 : f32
      %156 = vector.broadcast %cst_86 : f32 to vector<16x32xf32>
      %c0_87 = arith.constant 0 : index
      %c0_88 = arith.constant 0 : index
      %157 = vector.load %arg19[%c0_87, %c0_88] : memref<16x32xf32, #tpu.memory_space<vmem>>, vector<16x32xf32>
      tpu.vector_store %arg19[%c0_87, %c0_88], %156 {strides = array<i32>} : memref<16x32xf32, #tpu.memory_space<vmem>>, vector<16x32xf32>,
      %cst_89 = arith.constant 0.000000e+00 : f32
      %158 = vector.broadcast %cst_89 : f32 to vector<8x32xf32>
      %c0_90 = arith.constant 0 : index
      %c0_91 = arith.constant 0 : index
      %159 = vector.load %arg18[%c0_90, %c0_91] : memref<32x32xf32, #tpu.memory_space<vmem>>, vector<8x32xf32>
      tpu.vector_store %arg18[%c0_90, %c0_91], %158 {strides = array<i32>} : memref<32x32xf32, #tpu.memory_space<vmem>>, vector<8x32xf32>,
      %c24 = arith.constant 24 : index
      %c0_92 = arith.constant 0 : index
      %160 = vector.load %arg18[%c24, %c0_92] : memref<32x32xf32, #tpu.memory_space<vmem>>, vector<8x32xf32>
      tpu.vector_store %arg18[%c24, %c0_92], %158 {strides = array<i32>} : memref<32x32xf32, #tpu.memory_space<vmem>>, vector<8x32xf32>,
    } else {
    }
    %c0 = arith.constant 0 : index
    %c0_1 = arith.constant 0 : index
    %c0_2 = arith.constant 0 : index
    %c0_3 = arith.constant 0 : index
    %3 = vector.load %arg6[%c0, %c0_1, %c0_2, %c0_3] : memref<1x1x4x32xf32, #tpu.memory_space<vmem>>, vector<1x1x4x32xf32>
    %4 = vector.shape_cast %3 : vector<1x1x4x32xf32> to vector<4x32xf32>
    %5 = arith.index_cast %arg1 : i32 to index
    %6 = memref.load %arg3[%5] : memref<3xi32, #tpu.memory_space<smem>>
    %cst = arith.constant 0.000000e+00 : f32
    %7 = vector.broadcast %cst : f32 to vector<16x32xf32>
    %cst_4 = arith.constant 0.000000e+00 : f32
    %8 = vector.broadcast %cst_4 : f32 to vector<16x32xf32>
    %c-2_i32 = arith.constant -2 : i32
    %9 = arith.muli %c-2_i32, %6 : i32
    %c8_i32 = arith.constant 8 : i32
    %10 = arith.addi %c8_i32, %9 : i32
    %11 = arith.index_cast %10 : i32 to index
    %c0_5 = arith.constant 0 : index
    %12 = vector.load %arg18[%11, %c0_5] : memref<32x32xf32, #tpu.memory_space<vmem>>, vector<16x32xf32>
    %13 = arith.truncf %12 : vector<16x32xf32> to vector<16x32xbf16>
    %c5_i32 = arith.constant 5 : i32
    %14 = arith.muli %arg1, %c5_i32 : i32
    %c0_i32_6 = arith.constant 0 : i32
    %15 = arith.addi %14, %c0_i32_6 : i32
    %16 = arith.index_cast %15 : i32 to index
    %c0_7 = arith.constant 0 : index
    %c0_8 = arith.constant 0 : index
    %17 = vector.load %arg9[%16, %c0_7, %c0_8] : memref<15x32x32xbf16, #tpu.memory_space<vmem>>, vector<1x32x32xbf16>
    %18 = vector.shape_cast %17 : vector<1x32x32xbf16> to vector<32x32xbf16>
    %cst_9 = arith.constant dense<0.000000e+00> : vector<16x32xf32>
    %19 = tpu.matmul %13, %18, %cst_9 {dimension_numbers = #tpu.dot_dimension_numbers<[1], [0], [0], [1], [0, 0, 1, 1], [], []>} : vector<16x32xbf16>, vector<32x32xbf16>, vector<16x32xf32> -> vector<16x32xf32>
    %20 = arith.addf %7, %19 : vector<16x32xf32>
    %21 = arith.index_cast %15 : i32 to index
    %c0_10 = arith.constant 0 : index
    %c0_11 = arith.constant 0 : index
    %22 = vector.load %arg10[%21, %c0_10, %c0_11] : memref<15x32x32xbf16, #tpu.memory_space<vmem>>, vector<1x32x32xbf16>
    %23 = vector.shape_cast %22 : vector<1x32x32xbf16> to vector<32x32xbf16>
    %cst_12 = arith.constant dense<0.000000e+00> : vector<16x32xf32>
    %24 = tpu.matmul %13, %23, %cst_12 {dimension_numbers = #tpu.dot_dimension_numbers<[1], [0], [0], [1], [0, 0, 1, 1], [], []>} : vector<16x32xbf16>, vector<32x32xbf16>, vector<16x32xf32> -> vector<16x32xf32>
    %25 = arith.addf %8, %24 : vector<16x32xf32>
    %c-1_i32 = arith.constant -1 : i32
    %26 = arith.muli %c-1_i32, %6 : i32
    %c8_i32_13 = arith.constant 8 : i32
    %27 = arith.addi %c8_i32_13, %26 : i32
    %28 = arith.index_cast %27 : i32 to index
    %c0_14 = arith.constant 0 : index
    %29 = vector.load %arg18[%28, %c0_14] : memref<32x32xf32, #tpu.memory_space<vmem>>, vector<16x32xf32>
    %30 = arith.truncf %29 : vector<16x32xf32> to vector<16x32xbf16>
    %c5_i32_15 = arith.constant 5 : i32
    %31 = arith.muli %arg1, %c5_i32_15 : i32
    %c1_i32 = arith.constant 1 : i32
    %32 = arith.addi %31, %c1_i32 : i32
    %33 = arith.index_cast %32 : i32 to index
    %c0_16 = arith.constant 0 : index
    %c0_17 = arith.constant 0 : index
    %34 = vector.load %arg9[%33, %c0_16, %c0_17] : memref<15x32x32xbf16, #tpu.memory_space<vmem>>, vector<1x32x32xbf16>
    %35 = vector.shape_cast %34 : vector<1x32x32xbf16> to vector<32x32xbf16>
    %cst_18 = arith.constant dense<0.000000e+00> : vector<16x32xf32>
    %36 = tpu.matmul %30, %35, %cst_18 {dimension_numbers = #tpu.dot_dimension_numbers<[1], [0], [0], [1], [0, 0, 1, 1], [], []>} : vector<16x32xbf16>, vector<32x32xbf16>, vector<16x32xf32> -> vector<16x32xf32>
    %37 = arith.addf %20, %36 : vector<16x32xf32>
    %38 = arith.index_cast %32 : i32 to index
    %c0_19 = arith.constant 0 : index
    %c0_20 = arith.constant 0 : index
    %39 = vector.load %arg10[%38, %c0_19, %c0_20] : memref<15x32x32xbf16, #tpu.memory_space<vmem>>, vector<1x32x32xbf16>
    %40 = vector.shape_cast %39 : vector<1x32x32xbf16> to vector<32x32xbf16>
    %cst_21 = arith.constant dense<0.000000e+00> : vector<16x32xf32>
    %41 = tpu.matmul %30, %40, %cst_21 {dimension_numbers = #tpu.dot_dimension_numbers<[1], [0], [0], [1], [0, 0, 1, 1], [], []>} : vector<16x32xbf16>, vector<32x32xbf16>, vector<16x32xf32> -> vector<16x32xf32>
    %42 = arith.addf %25, %41 : vector<16x32xf32>
    %c0_i32_22 = arith.constant 0 : i32
    %43 = arith.muli %c0_i32_22, %6 : i32
    %c8_i32_23 = arith.constant 8 : i32
    %44 = arith.addi %c8_i32_23, %43 : i32
    %45 = arith.index_cast %44 : i32 to index
    %c0_24 = arith.constant 0 : index
    %46 = vector.load %arg18[%45, %c0_24] : memref<32x32xf32, #tpu.memory_space<vmem>>, vector<16x32xf32>
    %47 = arith.truncf %46 : vector<16x32xf32> to vector<16x32xbf16>
    %c5_i32_25 = arith.constant 5 : i32
    %48 = arith.muli %arg1, %c5_i32_25 : i32
    %c2_i32 = arith.constant 2 : i32
    %49 = arith.addi %48, %c2_i32 : i32
    %50 = arith.index_cast %49 : i32 to index
    %c0_26 = arith.constant 0 : index
    %c0_27 = arith.constant 0 : index
    %51 = vector.load %arg9[%50, %c0_26, %c0_27] : memref<15x32x32xbf16, #tpu.memory_space<vmem>>, vector<1x32x32xbf16>
    %52 = vector.shape_cast %51 : vector<1x32x32xbf16> to vector<32x32xbf16>
    %cst_28 = arith.constant dense<0.000000e+00> : vector<16x32xf32>
    %53 = tpu.matmul %47, %52, %cst_28 {dimension_numbers = #tpu.dot_dimension_numbers<[1], [0], [0], [1], [0, 0, 1, 1], [], []>} : vector<16x32xbf16>, vector<32x32xbf16>, vector<16x32xf32> -> vector<16x32xf32>
    %54 = arith.addf %37, %53 : vector<16x32xf32>
    %55 = arith.index_cast %49 : i32 to index
    %c0_29 = arith.constant 0 : index
    %c0_30 = arith.constant 0 : index
    %56 = vector.load %arg10[%55, %c0_29, %c0_30] : memref<15x32x32xbf16, #tpu.memory_space<vmem>>, vector<1x32x32xbf16>
    %57 = vector.shape_cast %56 : vector<1x32x32xbf16> to vector<32x32xbf16>
    %cst_31 = arith.constant dense<0.000000e+00> : vector<16x32xf32>
    %58 = tpu.matmul %47, %57, %cst_31 {dimension_numbers = #tpu.dot_dimension_numbers<[1], [0], [0], [1], [0, 0, 1, 1], [], []>} : vector<16x32xbf16>, vector<32x32xbf16>, vector<16x32xf32> -> vector<16x32xf32>
    %59 = arith.addf %42, %58 : vector<16x32xf32>
    %c1_i32_32 = arith.constant 1 : i32
    %60 = arith.muli %c1_i32_32, %6 : i32
    %c8_i32_33 = arith.constant 8 : i32
    %61 = arith.addi %c8_i32_33, %60 : i32
    %62 = arith.index_cast %61 : i32 to index
    %c0_34 = arith.constant 0 : index
    %63 = vector.load %arg18[%62, %c0_34] : memref<32x32xf32, #tpu.memory_space<vmem>>, vector<16x32xf32>
    %64 = arith.truncf %63 : vector<16x32xf32> to vector<16x32xbf16>
    %c5_i32_35 = arith.constant 5 : i32
    %65 = arith.muli %arg1, %c5_i32_35 : i32
    %c3_i32 = arith.constant 3 : i32
    %66 = arith.addi %65, %c3_i32 : i32
    %67 = arith.index_cast %66 : i32 to index
    %c0_36 = arith.constant 0 : index
    %c0_37 = arith.constant 0 : index
    %68 = vector.load %arg9[%67, %c0_36, %c0_37] : memref<15x32x32xbf16, #tpu.memory_space<vmem>>, vector<1x32x32xbf16>
    %69 = vector.shape_cast %68 : vector<1x32x32xbf16> to vector<32x32xbf16>
    %cst_38 = arith.constant dense<0.000000e+00> : vector<16x32xf32>
    %70 = tpu.matmul %64, %69, %cst_38 {dimension_numbers = #tpu.dot_dimension_numbers<[1], [0], [0], [1], [0, 0, 1, 1], [], []>} : vector<16x32xbf16>, vector<32x32xbf16>, vector<16x32xf32> -> vector<16x32xf32>
    %71 = arith.addf %54, %70 : vector<16x32xf32>
    %72 = arith.index_cast %66 : i32 to index
    %c0_39 = arith.constant 0 : index
    %c0_40 = arith.constant 0 : index
    %73 = vector.load %arg10[%72, %c0_39, %c0_40] : memref<15x32x32xbf16, #tpu.memory_space<vmem>>, vector<1x32x32xbf16>
    %74 = vector.shape_cast %73 : vector<1x32x32xbf16> to vector<32x32xbf16>
    %cst_41 = arith.constant dense<0.000000e+00> : vector<16x32xf32>
    %75 = tpu.matmul %64, %74, %cst_41 {dimension_numbers = #tpu.dot_dimension_numbers<[1], [0], [0], [1], [0, 0, 1, 1], [], []>} : vector<16x32xbf16>, vector<32x32xbf16>, vector<16x32xf32> -> vector<16x32xf32>
    %76 = arith.addf %59, %75 : vector<16x32xf32>
    %c2_i32_42 = arith.constant 2 : i32
    %77 = arith.muli %c2_i32_42, %6 : i32
    %c8_i32_43 = arith.constant 8 : i32
    %78 = arith.addi %c8_i32_43, %77 : i32
    %79 = arith.index_cast %78 : i32 to index
    %c0_44 = arith.constant 0 : index
    %80 = vector.load %arg18[%79, %c0_44] : memref<32x32xf32, #tpu.memory_space<vmem>>, vector<16x32xf32>
    %81 = arith.truncf %80 : vector<16x32xf32> to vector<16x32xbf16>
    %c5_i32_45 = arith.constant 5 : i32
    %82 = arith.muli %arg1, %c5_i32_45 : i32
    %c4_i32 = arith.constant 4 : i32
    %83 = arith.addi %82, %c4_i32 : i32
    %84 = arith.index_cast %83 : i32 to index
    %c0_46 = arith.constant 0 : index
    %c0_47 = arith.constant 0 : index
    %85 = vector.load %arg9[%84, %c0_46, %c0_47] : memref<15x32x32xbf16, #tpu.memory_space<vmem>>, vector<1x32x32xbf16>
    %86 = vector.shape_cast %85 : vector<1x32x32xbf16> to vector<32x32xbf16>
    %cst_48 = arith.constant dense<0.000000e+00> : vector<16x32xf32>
    %87 = tpu.matmul %81, %86, %cst_48 {dimension_numbers = #tpu.dot_dimension_numbers<[1], [0], [0], [1], [0, 0, 1, 1], [], []>} : vector<16x32xbf16>, vector<32x32xbf16>, vector<16x32xf32> -> vector<16x32xf32>
    %88 = arith.addf %71, %87 : vector<16x32xf32>
    %89 = arith.index_cast %83 : i32 to index
    %c0_49 = arith.constant 0 : index
    %c0_50 = arith.constant 0 : index
    %90 = vector.load %arg10[%89, %c0_49, %c0_50] : memref<15x32x32xbf16, #tpu.memory_space<vmem>>, vector<1x32x32xbf16>
    %91 = vector.shape_cast %90 : vector<1x32x32xbf16> to vector<32x32xbf16>
    %cst_51 = arith.constant dense<0.000000e+00> : vector<16x32xf32>
    %92 = tpu.matmul %81, %91, %cst_51 {dimension_numbers = #tpu.dot_dimension_numbers<[1], [0], [0], [1], [0, 0, 1, 1], [], []>} : vector<16x32xbf16>, vector<32x32xbf16>, vector<16x32xf32> -> vector<16x32xf32>
    %93 = arith.addf %76, %92 : vector<16x32xf32>
    %94 = vector.extract_strided_slice %4 {offsets = [0, 0], sizes = [1, 32], strides = [1, 1]} : vector<4x32xf32> to vector<1x32xf32>
    %95 = vector.broadcast %94 : vector<1x32xf32> to vector<16x32xf32>
    %96 = arith.addf %88, %95 : vector<16x32xf32>
    %97 = vector.extract_strided_slice %4 {offsets = [1, 0], sizes = [1, 32], strides = [1, 1]} : vector<4x32xf32> to vector<1x32xf32>
    %98 = vector.broadcast %97 : vector<1x32xf32> to vector<16x32xf32>
    %99 = arith.addf %93, %98 : vector<16x32xf32>
    %100 = math.tanh %96 : vector<16x32xf32>
    %cst_52 = arith.constant 5.000000e-01 : f32
    %101 = vector.broadcast %cst_52 : f32 to vector<16x32xf32>
    %102 = arith.mulf %101, %99 : vector<16x32xf32>
    %103 = math.tanh %102 : vector<16x32xf32>
    %cst_53 = arith.constant 5.000000e-01 : f32
    %104 = vector.broadcast %cst_53 : f32 to vector<16x32xf32>
    %105 = arith.mulf %104, %103 : vector<16x32xf32>
    %cst_54 = arith.constant 5.000000e-01 : f32
    %106 = vector.broadcast %cst_54 : f32 to vector<16x32xf32>
    %107 = arith.addf %105, %106 : vector<16x32xf32>
    %108 = arith.mulf %100, %107 : vector<16x32xf32>
    %109 = arith.truncf %108 : vector<16x32xf32> to vector<16x32xbf16>
    %110 = arith.index_cast %arg1 : i32 to index
    %c0_55 = arith.constant 0 : index
    %c0_56 = arith.constant 0 : index
    %111 = vector.load %arg11[%110, %c0_55, %c0_56] : memref<3x32x32xbf16, #tpu.memory_space<vmem>>, vector<1x32x32xbf16>
    %112 = vector.shape_cast %111 : vector<1x32x32xbf16> to vector<32x32xbf16>
    %cst_57 = arith.constant dense<0.000000e+00> : vector<16x32xf32>
    %113 = tpu.matmul %109, %112, %cst_57 {dimension_numbers = #tpu.dot_dimension_numbers<[1], [0], [0], [1], [0, 0, 1, 1], [], []>} : vector<16x32xbf16>, vector<32x32xbf16>, vector<16x32xf32> -> vector<16x32xf32>
    %114 = vector.extract_strided_slice %4 {offsets = [2, 0], sizes = [1, 32], strides = [1, 1]} : vector<4x32xf32> to vector<1x32xf32>
    %115 = vector.broadcast %114 : vector<1x32xf32> to vector<16x32xf32>
    %116 = arith.addf %113, %115 : vector<16x32xf32>
    %117 = arith.index_cast %arg1 : i32 to index
    %c0_58 = arith.constant 0 : index
    %c0_59 = arith.constant 0 : index
    %118 = vector.load %arg12[%117, %c0_58, %c0_59] : memref<3x32x32xbf16, #tpu.memory_space<vmem>>, vector<1x32x32xbf16>
    %119 = vector.shape_cast %118 : vector<1x32x32xbf16> to vector<32x32xbf16>
    %cst_60 = arith.constant dense<0.000000e+00> : vector<16x32xf32>
    %120 = tpu.matmul %109, %119, %cst_60 {dimension_numbers = #tpu.dot_dimension_numbers<[1], [0], [0], [1], [0, 0, 1, 1], [], []>} : vector<16x32xbf16>, vector<32x32xbf16>, vector<16x32xf32> -> vector<16x32xf32>
    %121 = vector.extract_strided_slice %4 {offsets = [3, 0], sizes = [1, 32], strides = [1, 1]} : vector<4x32xf32> to vector<1x32xf32>
    %122 = vector.broadcast %121 : vector<1x32xf32> to vector<16x32xf32>
    %123 = arith.addf %120, %122 : vector<16x32xf32>
    %c8 = arith.constant 8 : index
    %c0_61 = arith.constant 0 : index
    %124 = vector.load %arg18[%c8, %c0_61] : memref<32x32xf32, #tpu.memory_space<vmem>>, vector<16x32xf32>
    %125 = arith.addf %124, %116 : vector<16x32xf32>
    %c0_62 = arith.constant 0 : index
    %c0_63 = arith.constant 0 : index
    %126 = vector.load %arg20[%c0_62, %c0_63] : memref<16x32xf32, #tpu.memory_space<vmem>>, vector<16x32xf32>
    %127 = arith.mulf %125, %126 : vector<16x32xf32>
    %c8_64 = arith.constant 8 : index
    %c0_65 = arith.constant 0 : index
    %128 = vector.load %arg18[%c8_64, %c0_65] : memref<32x32xf32, #tpu.memory_space<vmem>>, vector<16x32xf32>
    tpu.vector_store %arg18[%c8_64, %c0_65], %127 {strides = array<i32>} : memref<32x32xf32, #tpu.memory_space<vmem>>, vector<16x32xf32>,
    %c0_66 = arith.constant 0 : index
    %c0_67 = arith.constant 0 : index
    %129 = vector.load %arg19[%c0_66, %c0_67] : memref<16x32xf32, #tpu.memory_space<vmem>>, vector<16x32xf32>
    %130 = arith.addf %129, %123 : vector<16x32xf32>
    %c0_68 = arith.constant 0 : index
    %c0_69 = arith.constant 0 : index
    %131 = vector.load %arg19[%c0_68, %c0_69] : memref<16x32xf32, #tpu.memory_space<vmem>>, vector<16x32xf32>
    tpu.vector_store %arg19[%c0_68, %c0_69], %130 {strides = array<i32>} : memref<16x32xf32, #tpu.memory_space<vmem>>, vector<16x32xf32>,
    %c2_i32_70 = arith.constant 2 : i32
    %132 = arith.cmpi eq, %arg1, %c2_i32_70 : i32
    %133 = arith.extui %132 : i1 to i32
    %c0_i32_71 = arith.constant 0 : i32
    %134 = arith.cmpi ne, %133, %c0_i32_71 : i32
    scf.if %134 {
      %c0_72 = arith.constant 0 : index
      %c0_73 = arith.constant 0 : index
      %135 = vector.load %arg21[%c0_72, %c0_73] : memref<16x1xf32, #tpu.memory_space<vmem>>, vector<16x1xf32>
      %c0_74 = arith.constant 0 : index
      %c0_75 = arith.constant 0 : index
      %136 = vector.load %arg19[%c0_74, %c0_75] : memref<16x32xf32, #tpu.memory_space<vmem>>, vector<16x32xf32>
      %c0_76 = arith.constant 0 : index
      %c0_77 = arith.constant 0 : index
      %137 = vector.load %arg20[%c0_76, %c0_77] : memref<16x32xf32, #tpu.memory_space<vmem>>, vector<16x32xf32>
      %138 = arith.mulf %136, %137 : vector<16x32xf32>
      %139 = arith.truncf %138 : vector<16x32xf32> to vector<16x32xbf16>
      %c0_78 = arith.constant 0 : index
      %c0_79 = arith.constant 0 : index
      %140 = vector.load %arg13[%c0_78, %c0_79] : memref<32x4xbf16, #tpu.memory_space<vmem>>, vector<32x4xbf16>
      %cst_80 = arith.constant dense<0.000000e+00> : vector<16x4xf32>
      %141 = tpu.matmul %139, %140, %cst_80 {dimension_numbers = #tpu.dot_dimension_numbers<[1], [0], [0], [1], [0, 0, 1, 1], [], []>} : vector<16x32xbf16>, vector<32x4xbf16>, vector<16x4xf32> -> vector<16x4xf32>
      %c0_81 = arith.constant 0 : index
      %c0_82 = arith.constant 0 : index
      %142 = vector.load %arg14[%c0_81, %c0_82] : memref<1x4xf32, #tpu.memory_space<vmem>>, vector<1x4xf32>
      %143 = vector.broadcast %142 : vector<1x4xf32> to vector<16x4xf32>
      %144 = arith.addf %141, %143 : vector<16x4xf32>
      %145 = vector.broadcast %135 : vector<16x1xf32> to vector<16x4xf32>
      %146 = arith.mulf %144, %145 : vector<16x4xf32>
      %c0_83 = arith.constant 0 : index
      %c0_84 = arith.constant 0 : index
      %147 = vector.load %arg15[%c0_83, %c0_84] : memref<32x4xbf16, #tpu.memory_space<vmem>>, vector<32x4xbf16>
      %cst_85 = arith.constant dense<0.000000e+00> : vector<16x4xf32>
      %148 = tpu.matmul %139, %147, %cst_85 {dimension_numbers = #tpu.dot_dimension_numbers<[1], [0], [0], [1], [0, 0, 1, 1], [], []>} : vector<16x32xbf16>, vector<32x4xbf16>, vector<16x4xf32> -> vector<16x4xf32>
      %c0_86 = arith.constant 0 : index
      %c0_87 = arith.constant 0 : index
      %149 = vector.load %arg16[%c0_86, %c0_87] : memref<1x4xf32, #tpu.memory_space<vmem>>, vector<1x4xf32>
      %150 = vector.broadcast %149 : vector<1x4xf32> to vector<16x4xf32>
      %151 = arith.addf %148, %150 : vector<16x4xf32>
      %152 = vector.broadcast %135 : vector<16x1xf32> to vector<16x4xf32>
      %153 = arith.mulf %151, %152 : vector<16x4xf32>
      %c0_88 = arith.constant 0 : index
      %c0_89 = arith.constant 0 : index
      %c0_90 = arith.constant 0 : index
      %154 = vector.load %arg5[%c0_88, %c0_89, %c0_90] : memref<1x16x4xf32, #tpu.memory_space<vmem>>, vector<1x16x4xf32>
      %155 = vector.shape_cast %154 : vector<1x16x4xf32> to vector<16x4xf32>
      %156 = math.exp %153 : vector<16x4xf32>
      %157 = arith.mulf %155, %156 : vector<16x4xf32>
      %158 = arith.addf %146, %157 : vector<16x4xf32>
      %159 = vector.broadcast %135 : vector<16x1xf32> to vector<16x4xf32>
      %160 = arith.mulf %158, %159 : vector<16x4xf32>
      %161 = tpu.concatenate %146, %153, %160 in 1 : vector<16x4xf32>, vector<16x4xf32>, vector<16x4xf32> -> vector<16x12xf32>
      %c0_91 = arith.constant 0 : index
      %c0_92 = arith.constant 0 : index
      %c0_93 = arith.constant 0 : index
      %162 = vector.load %arg17[%c0_91, %c0_92, %c0_93] : memref<1x16x12xf32, #tpu.memory_space<vmem>>, vector<1x16x12xf32>
      %163 = vector.shape_cast %162 : vector<1x16x12xf32> to vector<16x12xf32>
      %164 = vector.shape_cast %161 : vector<16x12xf32> to vector<1x16x12xf32>
      tpu.vector_store %arg17[%c0_91, %c0_92, %c0_93], %164 {strides = array<i32>} : memref<1x16x12xf32, #tpu.memory_space<vmem>>, vector<1x16x12xf32>,
    } else {
    }
    return
  }
  func.func @transform_0(%arg0: i32, %arg1: i32, %arg2: memref<2xi32, #tpu.memory_space<smem>>, %arg3: memref<3xi32, #tpu.memory_space<smem>>) -> (i32, i32, i32) {
    %c0_i32 = arith.constant 0 : i32
    %c0_i32_0 = arith.constant 0 : i32
    %c0_i32_1 = arith.constant 0 : i32
    return %arg0, %c0_i32, %c0_i32_0 : i32, i32, i32
  }
  func.func @transform_1(%arg0: i32, %arg1: i32, %arg2: memref<2xi32, #tpu.memory_space<smem>>, %arg3: memref<3xi32, #tpu.memory_space<smem>>) -> (i32, i32, i32) {
    %c0_i32 = arith.constant 0 : i32
    %c0_i32_0 = arith.constant 0 : i32
    %c0_i32_1 = arith.constant 0 : i32
    return %arg0, %c0_i32, %c0_i32_0 : i32, i32, i32
  }
  func.func @transform_2(%arg0: i32, %arg1: i32, %arg2: memref<2xi32, #tpu.memory_space<smem>>, %arg3: memref<3xi32, #tpu.memory_space<smem>>) -> (i32, i32, i32, i32) {
    %c0_i32 = arith.constant 0 : i32
    %c0_i32_0 = arith.constant 0 : i32
    %c0_i32_1 = arith.constant 0 : i32
    return %arg0, %arg1, %c0_i32, %c0_i32_0 : i32, i32, i32, i32
  }
  func.func @transform_3(%arg0: i32, %arg1: i32, %arg2: memref<2xi32, #tpu.memory_space<smem>>, %arg3: memref<3xi32, #tpu.memory_space<smem>>) -> (i32, i32) {
    %c0_i32 = arith.constant 0 : i32
    %c0_i32_0 = arith.constant 0 : i32
    %c0_i32_1 = arith.constant 0 : i32
    return %c0_i32, %c0_i32_0 : i32, i32
  }
  func.func @transform_4(%arg0: i32, %arg1: i32, %arg2: memref<2xi32, #tpu.memory_space<smem>>, %arg3: memref<3xi32, #tpu.memory_space<smem>>) -> (i32, i32) {
    %c0_i32 = arith.constant 0 : i32
    %c0_i32_0 = arith.constant 0 : i32
    %c0_i32_1 = arith.constant 0 : i32
    return %c0_i32, %c0_i32_0 : i32, i32
  }
  func.func @transform_5(%arg0: i32, %arg1: i32, %arg2: memref<2xi32, #tpu.memory_space<smem>>, %arg3: memref<3xi32, #tpu.memory_space<smem>>) -> (i32, i32, i32) {
    %c0_i32 = arith.constant 0 : i32
    %c0_i32_0 = arith.constant 0 : i32
    %c0_i32_1 = arith.constant 0 : i32
    %c0_i32_2 = arith.constant 0 : i32
    return %c0_i32, %c0_i32_0, %c0_i32_1 : i32, i32, i32
  }
  func.func @transform_6(%arg0: i32, %arg1: i32, %arg2: memref<2xi32, #tpu.memory_space<smem>>, %arg3: memref<3xi32, #tpu.memory_space<smem>>) -> (i32, i32, i32) {
    %c0_i32 = arith.constant 0 : i32
    %c0_i32_0 = arith.constant 0 : i32
    %c0_i32_1 = arith.constant 0 : i32
    %c0_i32_2 = arith.constant 0 : i32
    return %c0_i32, %c0_i32_0, %c0_i32_1 : i32, i32, i32
  }
  func.func @transform_7(%arg0: i32, %arg1: i32, %arg2: memref<2xi32, #tpu.memory_space<smem>>, %arg3: memref<3xi32, #tpu.memory_space<smem>>) -> (i32, i32, i32) {
    %c0_i32 = arith.constant 0 : i32
    %c0_i32_0 = arith.constant 0 : i32
    %c0_i32_1 = arith.constant 0 : i32
    %c0_i32_2 = arith.constant 0 : i32
    return %c0_i32, %c0_i32_0, %c0_i32_1 : i32, i32, i32
  }
  func.func @transform_8(%arg0: i32, %arg1: i32, %arg2: memref<2xi32, #tpu.memory_space<smem>>, %arg3: memref<3xi32, #tpu.memory_space<smem>>) -> (i32, i32, i32) {
    %c0_i32 = arith.constant 0 : i32
    %c0_i32_0 = arith.constant 0 : i32
    %c0_i32_1 = arith.constant 0 : i32
    %c0_i32_2 = arith.constant 0 : i32
    return %c0_i32, %c0_i32_0, %c0_i32_1 : i32, i32, i32
  }
  func.func @transform_9(%arg0: i32, %arg1: i32, %arg2: memref<2xi32, #tpu.memory_space<smem>>, %arg3: memref<3xi32, #tpu.memory_space<smem>>) -> (i32, i32) {
    %c0_i32 = arith.constant 0 : i32
    %c0_i32_0 = arith.constant 0 : i32
    %c0_i32_1 = arith.constant 0 : i32
    return %c0_i32, %c0_i32_0 : i32, i32
  }
  func.func @transform_10(%arg0: i32, %arg1: i32, %arg2: memref<2xi32, #tpu.memory_space<smem>>, %arg3: memref<3xi32, #tpu.memory_space<smem>>) -> (i32, i32) {
    %c0_i32 = arith.constant 0 : i32
    %c0_i32_0 = arith.constant 0 : i32
    %c0_i32_1 = arith.constant 0 : i32
    return %c0_i32, %c0_i32_0 : i32, i32
  }
  func.func @transform_11(%arg0: i32, %arg1: i32, %arg2: memref<2xi32, #tpu.memory_space<smem>>, %arg3: memref<3xi32, #tpu.memory_space<smem>>) -> (i32, i32) {
    %c0_i32 = arith.constant 0 : i32
    %c0_i32_0 = arith.constant 0 : i32
    %c0_i32_1 = arith.constant 0 : i32
    return %c0_i32, %c0_i32_0 : i32, i32
  }
  func.func @transform_12(%arg0: i32, %arg1: i32, %arg2: memref<2xi32, #tpu.memory_space<smem>>, %arg3: memref<3xi32, #tpu.memory_space<smem>>) -> (i32, i32) {
    %c0_i32 = arith.constant 0 : i32
    %c0_i32_0 = arith.constant 0 : i32
    %c0_i32_1 = arith.constant 0 : i32
    return %c0_i32, %c0_i32_0 : i32, i32
  }
  func.func @transform_13(%arg0: i32, %arg1: i32, %arg2: memref<2xi32, #tpu.memory_space<smem>>, %arg3: memref<3xi32, #tpu.memory_space<smem>>) -> (i32, i32, i32) {
    %c0_i32 = arith.constant 0 : i32
    %c0_i32_0 = arith.constant 0 : i32
    %c0_i32_1 = arith.constant 0 : i32
    return %arg0, %c0_i32, %c0_i32_0 : i32, i32, i32
  }
}

</mosaic_0001>

<llo_original>
// kernel: tpu_custom_call.1
$region0: #{tpu_custom_call.1}
  #allocation0 [shape = 'u32[]', space=smem, size = 0x4, offset = 0x4, fixed_abs, tag = 'smem constant byte address 0x4 - core index']
  #allocation1 [shape = 'u32[144,128]{1,0:T(1,128)}', space=vmem, size = 0x12000, scoped, tag = 'internal scratch']
  #allocation2 [shape = 'f32[32,32]{1,0:T(8,128)}', space=vmem, size = 0x4000, scoped, tag = 'scratch operand']
  #allocation3 [shape = 'f32[16,32]{1,0:T(8,128)}', space=vmem, size = 0x2000, scoped, tag = 'scratch operand']
  #allocation4 [shape = 'f32[16,32]{1,0:T(8,128)}', space=vmem, size = 0x2000, scoped, tag = 'scratch operand']
  #allocation5 [shape = 'f32[16,1]{1,0:T(8,128)}', space=vmem, size = 0x2000, scoped, tag = 'scratch operand']
  #allocation6 [shape = 's32[1]{0}', space=sflag, size = 0x4, scoped, tag = 'scoped memory for tpu_custom_call.1']
  #allocation7 [shape = 'u8[512]{0}', space=smem, size = 0x200, scoped, tag = 'prefetched SMEM operand 0']
  #allocation8 [shape = 'u8[512]{0}', space=smem, size = 0x200, scoped, tag = 'prefetched SMEM operand 1']
  %s0 = inlined_call_operand.hbm [shape: s32[2], index: 0, kind: input, shape index: {}]
  %s1 = inlined_call_operand.vmem [shape: s32[3], index: 1, kind: input, shape index: {}]
  %s2 = inlined_call_operand.vmem [shape: bf16[2,16,4], index: 2, kind: input, shape index: {}]
  %s3 = inlined_call_operand.vmem [shape: f32[2,16,4], index: 3, kind: input, shape index: {}]
  %s4 = inlined_call_operand.hbm [shape: f32[2,3,4,32], index: 4, kind: input, shape index: {}]
  %s5 = inlined_call_operand.vmem [shape: bf16[4,32], index: 5, kind: input, shape index: {}]
  %s6 = inlined_call_operand.vmem [shape: f32[1,32], index: 6, kind: input, shape index: {}]
  %s7 = inlined_call_operand.hbm [shape: bf16[15,32,32], index: 7, kind: input, shape index: {}]
  %s8 = inlined_call_operand.hbm [shape: bf16[15,32,32], index: 8, kind: input, shape index: {}]
  %s9 = inlined_call_operand.vmem [shape: bf16[3,32,32], index: 9, kind: input, shape index: {}]
  %s10 = inlined_call_operand.vmem [shape: bf16[3,32,32], index: 10, kind: input, shape index: {}]
  %s11 = inlined_call_operand.vmem [shape: bf16[32,4], index: 11, kind: input, shape index: {}]
  %s12 = inlined_call_operand.vmem [shape: f32[1,4], index: 12, kind: input, shape index: {}]
  %s13 = inlined_call_operand.vmem [shape: bf16[32,4], index: 13, kind: input, shape index: {}]
  %s14 = inlined_call_operand.vmem [shape: f32[1,4], index: 14, kind: input, shape index: {}]
  %s15 = inlined_call_operand.vmem [shape: f32[2,16,12], index: 15, kind: output, shape index: {}]
  %s16 = sld [smem:[#allocation0]]
  $region105: #{tpu_custom_call.1} parent=0
    _
  %s18 = ssub.s32 1, %s16
  %s19 = scalar_select 0, %s18, %s16
  %21 = dma.hbm_to_smem %s0, 16, [#allocation7], [#allocation6]
  %s22 = sshll.u32 %s1, 4
  %s23 = int_to_ptr.vmem [resolvable:$true] %s22
  %25 = dma.vmem_to_smem %s23, 16, [#allocation8], [#allocation6]
  %26 = dma.done [#allocation6], 32
  %27 = sfence
  $region1: #{tpu_custom_call.1} parent=0
    #allocation9 [shape = 'u8[4096]{0}', space=vmem, size = 0x1000, scoped, tag = 'input window, operand 4']
    #allocation10 [shape = 's32[2]{0}', space=sflag, size = 0x8, scoped, tag = 'scoped memory for tpu_custom_call.1']
    #allocation11 [shape = 'u8[122880]{0}', space=vmem, size = 0x1e000, scoped, tag = 'input window, operand 7, single buffered']
    #allocation12 [shape = 's32[1]{0}', space=sflag, size = 0x4, scoped, tag = 'scoped memory for tpu_custom_call.1']
    #allocation13 [shape = 'u8[122880]{0}', space=vmem, size = 0x1e000, scoped, tag = 'input window, operand 8, single buffered']
    %28 = vsyncpa [#allocation10], 0
    %s29 = scalar_lea.sflag [#allocation10], 1
    %30 = vsyncpa %s29, 0
    %31 = vsyncpa [#allocation12], 0
    loop: start=0, step=1, limit=8
    $region2: #{tpu_custom_call.1} parent=1 // loop_pre_header
      _
    $region3: #{tpu_custom_call.1} parent=1 // loop_header
      %s33 = sphi 0, %s37
      %p34 = scmp.ge.s32.totalorder %s33, 8
      %s40 = sphi 0, %s52
      %s41 = sphi 0, %s48
      %s42 = sphi 0, %s40
      %s43 = sphi 0, %s41
      %s44 = sphi 0, %s42
      %s45 = sphi 0, %s43
      %s55 = sphi 0, %s57
      %s58 = sphi 0, %s55
      %s59 = sphi 0, %s58
      %s75 = sphi 0, %s59
      %s81 = sphi 0, %s83
      %s84 = sphi 0, %s81
      %s85 = sphi 0, %s84
      %s101 = sphi 0, %s85
      %s109 = sphi 0, %s111
      %s112 = sphi 0, %s109
      %s113 = sphi 0, %s112
      %s129 = sphi 0, %s113
      %s133 = sphi 0, %s133
      %s135 = sphi 0, %s133
      %s136 = sphi 0, %s135
      %s150 = sphi 0, %s136
      %s154 = sphi 0, %s154
      %s156 = sphi 0, %s154
      %s157 = sphi 0, %s156
      %s171 = sphi 0, %s157
      %s175 = sphi 0, %s175
      %s177 = sphi 0, %s175
      %s178 = sphi 0, %s177
      %s192 = sphi 0, %s178
      %s196 = sphi 0, %s196
      %s198 = sphi 0, %s196
      %s199 = sphi 0, %s198
      %s213 = sphi 0, %s199
      %s217 = sphi 0, %s217
      %s219 = sphi 0, %s217
      %s220 = sphi 0, %s219
      %s234 = sphi 0, %s220
      %s238 = sphi 0, %s238
      %s240 = sphi 0, %s238
      %s241 = sphi 0, %s240
      %s255 = sphi 0, %s241
      %s259 = sphi 0, %s259
      %s261 = sphi 0, %s259
      %s262 = sphi 0, %s261
      %s276 = sphi 0, %s262
      %s280 = sphi 0, %s280
      %s282 = sphi 0, %s280
      %s283 = sphi 0, %s282
      %s297 = sphi 0, %s283
      %s301 = sphi 0, %s301
      %s303 = sphi 0, %s301
      %s304 = sphi 0, %s303
      %s318 = sphi 0, %s304
      %s322 = sphi 0, %s322
      %s324 = sphi 0, %s322
      %s325 = sphi 0, %s324
      %s339 = sphi 0, %s325
      %s345 = sphi 0, %s347
      %s348 = sphi 0, %s345
      %s349 = sphi 0, %s348
      %s365 = sphi 0, %s349
    $region4: #{tpu_custom_call.1} parent=1 // loop_header_branch
      %36 = sbr.rel (%p34) target = $region8
    $region5: #{tpu_custom_call.1} parent=1 // loop_body
      %s38 = ssub.s32 %s33, 1
      %s39 = ssub.s32 %s33, 2
      %s46 = sadd.s32 1, %s41
      %p47 = scmp.ge.s32.totalorder %s46, 3
      %s48 = scalar_select %p47, 0, %s46
      %s49 = sadd.s32 1, %s40
      %s50 = scalar_select %p47, %s49, %s40
      %p51 = scmp.ge.s32.totalorder %s50, 2
      %s52 = scalar_select %p51, 0, %s50
      %s53 = ssub.s32 %s40, %s52
      %p54 = scmp.eq.s32.totalorder %s53, 0
      %s56 = sadd.s32 %s55, 1
      %s57 = scalar_select %p54, %s55, %s56
      %p60 = pneg %p54
      %p61 = scmp.eq.s32.totalorder %s33, 5
      %p62 = por %p60, %p61
      %p63 = scmp.ne.s32.totalorder %s55, %s58
      %p64 = scmp.eq.s32.totalorder %s33, 0
      %p65 = por %p63, %p64
      %p66 = scmp.ne.s32.totalorder %s55, %s58
      %p67 = scmp.eq.s32.totalorder %s38, 5
      %p68 = por %p66, %p67
      %p69 = scmp.ne.s32.totalorder %s58, %s59
      %p70 = scmp.eq.s32.totalorder %s38, 0
      %p71 = por %p69, %p70
      %p72 = scmp.ne.s32.totalorder %s58, %s59
      %p73 = scmp.eq.s32.totalorder %s39, 5
      %p74 = por %p72, %p73
      %p76 = scmp.ne.s32.totalorder %s59, %s75
      %p77 = scmp.eq.s32.totalorder %s39, 0
      %p78 = por %p76, %p77
      %s79 = ssub.s32 %s40, %s52
      %p80 = scmp.eq.s32.totalorder %s79, 0
      %s82 = sadd.s32 %s81, 1
      %s83 = scalar_select %p80, %s81, %s82
      %p86 = pneg %p80
      %p87 = scmp.eq.s32.totalorder %s33, 5
      %p88 = por %p86, %p87
      %p89 = scmp.ne.s32.totalorder %s81, %s84
      %p90 = scmp.eq.s32.totalorder %s33, 0
      %p91 = por %p89, %p90
      %p92 = scmp.ne.s32.totalorder %s81, %s84
      %p93 = scmp.eq.s32.totalorder %s38, 5
      %p94 = por %p92, %p93
      %p95 = scmp.ne.s32.totalorder %s84, %s85
      %p96 = scmp.eq.s32.totalorder %s38, 0
      %p97 = por %p95, %p96
      %p98 = scmp.ne.s32.totalorder %s84, %s85
      %p99 = scmp.eq.s32.totalorder %s39, 5
      %p100 = por %p98, %p99
      %p102 = scmp.ne.s32.totalorder %s85, %s101
      %p103 = scmp.eq.s32.totalorder %s39, 0
      %p104 = por %p102, %p103
      %s105 = ssub.s32 %s40, %s52
      %s106 = ssub.s32 %s41, %s48
      %s107 = sor.u32 %s105, %s106
      %p108 = scmp.eq.s32.totalorder %s107, 0
      %s110 = sadd.s32 %s109, 1
      %s111 = scalar_select %p108, %s109, %s110
      %p114 = pneg %p108
      %p115 = scmp.eq.s32.totalorder %s33, 5
      %p116 = por %p114, %p115
      %p117 = scmp.ne.s32.totalorder %s109, %s112
      %p118 = scmp.eq.s32.totalorder %s33, 0
      %p119 = por %p117, %p118
      %p120 = scmp.ne.s32.totalorder %s109, %s112
      %p121 = scmp.eq.s32.totalorder %s38, 5
      %p122 = por %p120, %p121
      %p123 = scmp.ne.s32.totalorder %s112, %s113
      %p124 = scmp.eq.s32.totalorder %s38, 0
      %p125 = por %p123, %p124
      %p126 = scmp.ne.s32.totalorder %s112, %s113
      %p127 = scmp.eq.s32.totalorder %s39, 5
      %p128 = por %p126, %p127
      %p130 = scmp.ne.s32.totalorder %s113, %s129
      %p131 = scmp.eq.s32.totalorder %s39, 0
      %p132 = por %p130, %p131
      %s134 = sadd.s32 %s133, 1
      %p137 = scmp.eq.s32.totalorder %s33, 5
      %p138 = scmp.ne.s32.totalorder %s133, %s135
      %p139 = scmp.eq.s32.totalorder %s33, 0
      %p140 = por %p138, %p139
      %p141 = scmp.ne.s32.totalorder %s133, %s135
      %p142 = scmp.eq.s32.totalorder %s38, 5
      %p143 = por %p141, %p142
      %p144 = scmp.ne.s32.totalorder %s135, %s136
      %p145 = scmp.eq.s32.totalorder %s38, 0
      %p146 = por %p144, %p145
      %p147 = scmp.ne.s32.totalorder %s135, %s136
      %p148 = scmp.eq.s32.totalorder %s39, 5
      %p149 = por %p147, %p148
      %p151 = scmp.ne.s32.totalorder %s136, %s150
      %p152 = scmp.eq.s32.totalorder %s39, 0
      %p153 = por %p151, %p152
      %s155 = sadd.s32 %s154, 1
      %p158 = scmp.eq.s32.totalorder %s33, 5
      %p159 = scmp.ne.s32.totalorder %s154, %s156
      %p160 = scmp.eq.s32.totalorder %s33, 0
      %p161 = por %p159, %p160
      %p162 = scmp.ne.s32.totalorder %s154, %s156
      %p163 = scmp.eq.s32.totalorder %s38, 5
      %p164 = por %p162, %p163
      %p165 = scmp.ne.s32.totalorder %s156, %s157
      %p166 = scmp.eq.s32.totalorder %s38, 0
      %p167 = por %p165, %p166
      %p168 = scmp.ne.s32.totalorder %s156, %s157
      %p169 = scmp.eq.s32.totalorder %s39, 5
      %p170 = por %p168, %p169
      %p172 = scmp.ne.s32.totalorder %s157, %s171
      %p173 = scmp.eq.s32.totalorder %s39, 0
      %p174 = por %p172, %p173
      %s176 = sadd.s32 %s175, 1
      %p179 = scmp.eq.s32.totalorder %s33, 5
      %p180 = scmp.ne.s32.totalorder %s175, %s177
      %p181 = scmp.eq.s32.totalorder %s33, 0
      %p182 = por %p180, %p181
      %p183 = scmp.ne.s32.totalorder %s175, %s177
      %p184 = scmp.eq.s32.totalorder %s38, 5
      %p185 = por %p183, %p184
      %p186 = scmp.ne.s32.totalorder %s177, %s178
      %p187 = scmp.eq.s32.totalorder %s38, 0
      %p188 = por %p186, %p187
      %p189 = scmp.ne.s32.totalorder %s177, %s178
      %p190 = scmp.eq.s32.totalorder %s39, 5
      %p191 = por %p189, %p190
      %p193 = scmp.ne.s32.totalorder %s178, %s192
      %p194 = scmp.eq.s32.totalorder %s39, 0
      %p195 = por %p193, %p194
      %s197 = sadd.s32 %s196, 1
      %p200 = scmp.eq.s32.totalorder %s33, 5
      %p201 = scmp.ne.s32.totalorder %s196, %s198
      %p202 = scmp.eq.s32.totalorder %s33, 0
      %p203 = por %p201, %p202
      %p204 = scmp.ne.s32.totalorder %s196, %s198
      %p205 = scmp.eq.s32.totalorder %s38, 5
      %p206 = por %p204, %p205
      %p207 = scmp.ne.s32.totalorder %s198, %s199
      %p208 = scmp.eq.s32.totalorder %s38, 0
      %p209 = por %p207, %p208
      %p210 = scmp.ne.s32.totalorder %s198, %s199
      %p211 = scmp.eq.s32.totalorder %s39, 5
      %p212 = por %p210, %p211
      %p214 = scmp.ne.s32.totalorder %s199, %s213
      %p215 = scmp.eq.s32.totalorder %s39, 0
      %p216 = por %p214, %p215
      %s218 = sadd.s32 %s217, 1
      %p221 = scmp.eq.s32.totalorder %s33, 5
      %p222 = scmp.ne.s32.totalorder %s217, %s219
      %p223 = scmp.eq.s32.totalorder %s33, 0
      %p224 = por %p222, %p223
      %p225 = scmp.ne.s32.totalorder %s217, %s219
      %p226 = scmp.eq.s32.totalorder %s38, 5
      %p227 = por %p225, %p226
      %p228 = scmp.ne.s32.totalorder %s219, %s220
      %p229 = scmp.eq.s32.totalorder %s38, 0
      %p230 = por %p228, %p229
      %p231 = scmp.ne.s32.totalorder %s219, %s220
      %p232 = scmp.eq.s32.totalorder %s39, 5
      %p233 = por %p231, %p232
      %p235 = scmp.ne.s32.totalorder %s220, %s234
      %p236 = scmp.eq.s32.totalorder %s39, 0
      %p237 = por %p235, %p236
      %s239 = sadd.s32 %s238, 1
      %p242 = scmp.eq.s32.totalorder %s33, 5
      %p243 = scmp.ne.s32.totalorder %s238, %s240
      %p244 = scmp.eq.s32.totalorder %s33, 0
      %p245 = por %p243, %p244
      %p246 = scmp.ne.s32.totalorder %s238, %s240
      %p247 = scmp.eq.s32.totalorder %s38, 5
      %p248 = por %p246, %p247
      %p249 = scmp.ne.s32.totalorder %s240, %s241
      %p250 = scmp.eq.s32.totalorder %s38, 0
      %p251 = por %p249, %p250
      %p252 = scmp.ne.s32.totalorder %s240, %s241
      %p253 = scmp.eq.s32.totalorder %s39, 5
      %p254 = por %p252, %p253
      %p256 = scmp.ne.s32.totalorder %s241, %s255
      %p257 = scmp.eq.s32.totalorder %s39, 0
      %p258 = por %p256, %p257
      %s260 = sadd.s32 %s259, 1
      %p263 = scmp.eq.s32.totalorder %s33, 5
      %p264 = scmp.ne.s32.totalorder %s259, %s261
      %p265 = scmp.eq.s32.totalorder %s33, 0
      %p266 = por %p264, %p265
      %p267 = scmp.ne.s32.totalorder %s259, %s261
      %p268 = scmp.eq.s32.totalorder %s38, 5
      %p269 = por %p267, %p268
      %p270 = scmp.ne.s32.totalorder %s261, %s262
      %p271 = scmp.eq.s32.totalorder %s38, 0
      %p272 = por %p270, %p271
      %p273 = scmp.ne.s32.totalorder %s261, %s262
      %p274 = scmp.eq.s32.totalorder %s39, 5
      %p275 = por %p273, %p274
      %p277 = scmp.ne.s32.totalorder %s262, %s276
      %p278 = scmp.eq.s32.totalorder %s39, 0
      %p279 = por %p277, %p278
      %s281 = sadd.s32 %s280, 1
      %p284 = scmp.eq.s32.totalorder %s33, 5
      %p285 = scmp.ne.s32.totalorder %s280, %s282
      %p286 = scmp.eq.s32.totalorder %s33, 0
      %p287 = por %p285, %p286
      %p288 = scmp.ne.s32.totalorder %s280, %s282
      %p289 = scmp.eq.s32.totalorder %s38, 5
      %p290 = por %p288, %p289
      %p291 = scmp.ne.s32.totalorder %s282, %s283
      %p292 = scmp.eq.s32.totalorder %s38, 0
      %p293 = por %p291, %p292
      %p294 = scmp.ne.s32.totalorder %s282, %s283
      %p295 = scmp.eq.s32.totalorder %s39, 5
      %p296 = por %p294, %p295
      %p298 = scmp.ne.s32.totalorder %s283, %s297
      %p299 = scmp.eq.s32.totalorder %s39, 0
      %p300 = por %p298, %p299
      %s302 = sadd.s32 %s301, 1
      %p305 = scmp.eq.s32.totalorder %s33, 5
      %p306 = scmp.ne.s32.totalorder %s301, %s303
      %p307 = scmp.eq.s32.totalorder %s33, 0
      %p308 = por %p306, %p307
      %p309 = scmp.ne.s32.totalorder %s301, %s303
      %p310 = scmp.eq.s32.totalorder %s38, 5
      %p311 = por %p309, %p310
      %p312 = scmp.ne.s32.totalorder %s303, %s304
      %p313 = scmp.eq.s32.totalorder %s38, 0
      %p314 = por %p312, %p313
      %p315 = scmp.ne.s32.totalorder %s303, %s304
      %p316 = scmp.eq.s32.totalorder %s39, 5
      %p317 = por %p315, %p316
      %p319 = scmp.ne.s32.totalorder %s304, %s318
      %p320 = scmp.eq.s32.totalorder %s39, 0
      %p321 = por %p319, %p320
      %s323 = sadd.s32 %s322, 1
      %p326 = scmp.eq.s32.totalorder %s33, 5
      %p327 = scmp.ne.s32.totalorder %s322, %s324
      %p328 = scmp.eq.s32.totalorder %s33, 0
      %p329 = por %p327, %p328
      %p330 = scmp.ne.s32.totalorder %s322, %s324
      %p331 = scmp.eq.s32.totalorder %s38, 5
      %p332 = por %p330, %p331
      %p333 = scmp.ne.s32.totalorder %s324, %s325
      %p334 = scmp.eq.s32.totalorder %s38, 0
      %p335 = por %p333, %p334
      %p336 = scmp.ne.s32.totalorder %s324, %s325
      %p337 = scmp.eq.s32.totalorder %s39, 5
      %p338 = por %p336, %p337
      %p340 = scmp.ne.s32.totalorder %s325, %s339
      %p341 = scmp.eq.s32.totalorder %s39, 0
      %p342 = por %p340, %p341
      %s343 = ssub.s32 %s40, %s52
      %p344 = scmp.eq.s32.totalorder %s343, 0
      %s346 = sadd.s32 %s345, 1
      %s347 = scalar_select %p344, %s345, %s346
      %p350 = pneg %p344
      %p351 = scmp.eq.s32.totalorder %s33, 5
      %p352 = por %p350, %p351
      %p353 = scmp.ne.s32.totalorder %s345, %s348
      %p354 = scmp.eq.s32.totalorder %s33, 0
      %p355 = por %p353, %p354
      %p356 = scmp.ne.s32.totalorder %s345, %s348
      %p357 = scmp.eq.s32.totalorder %s38, 5
      %p358 = por %p356, %p357
      %p359 = scmp.ne.s32.totalorder %s348, %s349
      %p360 = scmp.eq.s32.totalorder %s38, 0
      %p361 = por %p359, %p360
      %p362 = scmp.ne.s32.totalorder %s348, %s349
      %p363 = scmp.eq.s32.totalorder %s39, 5
      %p364 = por %p362, %p363
      %p366 = scmp.ne.s32.totalorder %s349, %s365
      %p367 = scmp.eq.s32.totalorder %s39, 0
      %p368 = por %p366, %p367
      %p369 = scmp.le.s32.totalorder 1, %s33
      %p370 = scmp.lt.s32.totalorder %s33, 7
      %p371 = pnand %p369, %p370
      %p372 = pneg %p371
      // Predicated region
      $region9: #{tpu_custom_call.1} parent=5 // pred_check
        _
      $region10: #{tpu_custom_call.1} parent=5 // pred_check_branch
        %374 = sbr.rel (%p371) target = $region12
      $region11: #{tpu_custom_call.1} parent=5 // pred_region
        %s375 = ssub.s32 %s33, 1
        // Predicated region
        $region13: #{tpu_custom_call.1} parent=11 // pred_check
          %p376 = pneg %p146
        $region14: #{tpu_custom_call.1} parent=11 // pred_check_branch
          %378 = sbr.rel (%p376) target = $region16
        $region15: #{tpu_custom_call.1} parent=11 // pred_region
          _
        $region16: #{tpu_custom_call.1} parent=11 // pred_fallthru
          _
        // Predicated region
        $region17: #{tpu_custom_call.1} parent=11 // pred_check
          %p379 = pneg %p167
        $region18: #{tpu_custom_call.1} parent=11 // pred_check_branch
          %381 = sbr.rel (%p379) target = $region20
        $region19: #{tpu_custom_call.1} parent=11 // pred_region
          _
        $region20: #{tpu_custom_call.1} parent=11 // pred_fallthru
          _
        // Predicated region
        $region21: #{tpu_custom_call.1} parent=11 // pred_check
          %p382 = pneg %p188
        $region22: #{tpu_custom_call.1} parent=11 // pred_check_branch
          %384 = sbr.rel (%p382) target = $region24
        $region23: #{tpu_custom_call.1} parent=11 // pred_region
          %s386 = ssub.s32 3840, 3840
          %387 = vsyncadd [#allocation12], %s386
          %s388 = sshll.u32 [#allocation11], 4
          %s389 = int_to_ptr.vmem [resolvable:$true] %s388
          %394 = dma.hbm_to_vmem [thread:$0]  %s7, 3840, %s389, [#allocation12], 64, 64, 4
        $region24: #{tpu_custom_call.1} parent=11 // pred_fallthru
          _
        // Predicated region
        $region25: #{tpu_custom_call.1} parent=11 // pred_check
          %p395 = pneg %p209
        $region26: #{tpu_custom_call.1} parent=11 // pred_check_branch
          %397 = sbr.rel (%p395) target = $region28
        $region27: #{tpu_custom_call.1} parent=11 // pred_region
          %s399 = ssub.s32 3840, 3840
          %400 = vsyncadd [#allocation12], %s399
          %s401 = sshll.u32 [#allocation13], 4
          %s402 = int_to_ptr.vmem [resolvable:$true] %s401
          %407 = dma.hbm_to_vmem [thread:$0]  %s8, 3840, %s402, [#allocation12], 64, 64, 4
        $region28: #{tpu_custom_call.1} parent=11 // pred_fallthru
          _
        // Predicated region
        $region29: #{tpu_custom_call.1} parent=11 // pred_check
          %p408 = pneg %p230
        $region30: #{tpu_custom_call.1} parent=11 // pred_check_branch
          %410 = sbr.rel (%p408) target = $region32
        $region31: #{tpu_custom_call.1} parent=11 // pred_region
          _
        $region32: #{tpu_custom_call.1} parent=11 // pred_fallthru
          _
        // Predicated region
        $region33: #{tpu_custom_call.1} parent=11 // pred_check
          %p411 = pneg %p251
        $region34: #{tpu_custom_call.1} parent=11 // pred_check_branch
          %413 = sbr.rel (%p411) target = $region36
        $region35: #{tpu_custom_call.1} parent=11 // pred_region
          _
        $region36: #{tpu_custom_call.1} parent=11 // pred_fallthru
          _
        // Predicated region
        $region37: #{tpu_custom_call.1} parent=11 // pred_check
          %p414 = pneg %p272
        $region38: #{tpu_custom_call.1} parent=11 // pred_check_branch
          %416 = sbr.rel (%p414) target = $region40
        $region39: #{tpu_custom_call.1} parent=11 // pred_region
          _
        $region40: #{tpu_custom_call.1} parent=11 // pred_fallthru
          _
        // Predicated region
        $region41: #{tpu_custom_call.1} parent=11 // pred_check
          %p417 = pneg %p293
        $region42: #{tpu_custom_call.1} parent=11 // pred_check_branch
          %419 = sbr.rel (%p417) target = $region44
        $region43: #{tpu_custom_call.1} parent=11 // pred_region
          _
        $region44: #{tpu_custom_call.1} parent=11 // pred_fallthru
          _
        // Predicated region
        $region45: #{tpu_custom_call.1} parent=11 // pred_check
          %p420 = pneg %p314
        $region46: #{tpu_custom_call.1} parent=11 // pred_check_branch
          %422 = sbr.rel (%p420) target = $region48
        $region47: #{tpu_custom_call.1} parent=11 // pred_region
          _
        $region48: #{tpu_custom_call.1} parent=11 // pred_fallthru
          _
        // Predicated region
        $region49: #{tpu_custom_call.1} parent=11 // pred_check
          %p423 = pneg %p335
        $region50: #{tpu_custom_call.1} parent=11 // pred_check_branch
          %425 = sbr.rel (%p423) target = $region52
        $region51: #{tpu_custom_call.1} parent=11 // pred_region
          _
        $region52: #{tpu_custom_call.1} parent=11 // pred_fallthru
          _
      $region12: #{tpu_custom_call.1} parent=5 // pred_fallthru
        _
      %p426 = scmp.lt.s32.totalorder %s33, 6
      // Predicated region
      $region53: #{tpu_custom_call.1} parent=5 // pred_check
        %p427 = pneg %p426
      $region54: #{tpu_custom_call.1} parent=5 // pred_check_branch
        %429 = sbr.rel (%p427) target = $region56
      $region55: #{tpu_custom_call.1} parent=5 // pred_region
        // Predicated region
        $region57: #{tpu_custom_call.1} parent=55 // pred_check
          %p430 = pneg %p65
        $region58: #{tpu_custom_call.1} parent=55 // pred_check_branch
          %432 = sbr.rel (%p430) target = $region60
        $region59: #{tpu_custom_call.1} parent=55 // pred_region
          %p433 = scmp.lt.s32.totalorder %s40, 1
          %s434 = scalar_select %p433, %s40, 1
          %s435 = smul.addr %s434, 2
          %s436 = smul.addr %s435, 4
          %s437 = scalar_lea.vmem %s2, %s436
        $region60: #{tpu_custom_call.1} parent=55 // pred_fallthru
          _
        // Predicated region
        $region61: #{tpu_custom_call.1} parent=55 // pred_check
          %p438 = pneg %p91
        $region62: #{tpu_custom_call.1} parent=55 // pred_check_branch
          %440 = sbr.rel (%p438) target = $region64
        $region63: #{tpu_custom_call.1} parent=55 // pred_region
          %p441 = scmp.lt.s32.totalorder %s40, 1
          %s442 = scalar_select %p441, %s40, 1
          %s443 = smul.addr %s442, 2
          %s444 = smul.addr %s443, 8
          %s445 = scalar_lea.vmem %s3, %s444
        $region64: #{tpu_custom_call.1} parent=55 // pred_fallthru
          _
        // Predicated region
        $region65: #{tpu_custom_call.1} parent=55 // pred_check
          %p446 = pneg %p119
        $region66: #{tpu_custom_call.1} parent=55 // pred_check_branch
          %448 = sbr.rel (%p446) target = $region68
        $region67: #{tpu_custom_call.1} parent=55 // pred_region
          %s449 = sand.u32 %s109, 1
          %s450 = scalar_lea.sflag [#allocation10], %s449
          %s451 = sand.u32 %s109, 1
          %s452 = smul.addr %s451, 4
          %s453 = scalar_lea.vmem [#allocation9], %s452
          %s455 = ssub.s32 64, 64
          %456 = vsyncadd %s450, %s455
          %s457 = smul.addr %s40, 3
          %s458 = sadd.s32 %s41, %s457
          %s459 = smul.addr %s458, 64
          %s460 = scalar_lea.hbm %s4, %s459
          %s462 = sshll.u32 %s453, 4
          %s463 = int_to_ptr.vmem [resolvable:$true] %s462
          %465 = dma.hbm_to_vmem [thread:$0]  %s460, 64, %s463, %s450
        $region68: #{tpu_custom_call.1} parent=55 // pred_fallthru
          _
      $region56: #{tpu_custom_call.1} parent=5 // pred_fallthru
        _
      %p466 = scmp.le.s32.totalorder 1, %s33
      %p467 = scmp.lt.s32.totalorder %s33, 7
      %p468 = pnand %p466, %p467
      %p469 = pneg %p468
      // Predicated region
      $region69: #{tpu_custom_call.1} parent=5 // pred_check
        _
      $region70: #{tpu_custom_call.1} parent=5 // pred_check_branch
        %471 = sbr.rel (%p468) target = $region72
      $region71: #{tpu_custom_call.1} parent=5 // pred_region
        %s472 = ssub.s32 %s33, 1
        %s473 = sand.u32 %s112, 1
        %s474 = scalar_lea.sflag [#allocation10], %s473
        %s475 = sand.u32 %s112, 1
        %s476 = smul.addr %s475, 4
        %s477 = scalar_lea.vmem [#allocation9], %s476
        // Predicated region
        $region73: #{tpu_custom_call.1} parent=71 // pred_check
          %p478 = pneg %p125
        $region74: #{tpu_custom_call.1} parent=71 // pred_check_branch
          %480 = sbr.rel (%p478) target = $region76
        $region75: #{tpu_custom_call.1} parent=71 // pred_region
          %481 = dma.done %s474, 64
        $region76: #{tpu_custom_call.1} parent=71 // pred_fallthru
          _
        // Predicated region
        $region77: #{tpu_custom_call.1} parent=71 // pred_check
          %p482 = pneg %p188
        $region78: #{tpu_custom_call.1} parent=71 // pred_check_branch
          %484 = sbr.rel (%p482) target = $region80
        $region79: #{tpu_custom_call.1} parent=71 // pred_region
          %485 = dma.done [#allocation12], 3840
        $region80: #{tpu_custom_call.1} parent=71 // pred_fallthru
          _
        // Predicated region
        $region81: #{tpu_custom_call.1} parent=71 // pred_check
          %p486 = pneg %p209
        $region82: #{tpu_custom_call.1} parent=71 // pred_check_branch
          %488 = sbr.rel (%p486) target = $region84
        $region83: #{tpu_custom_call.1} parent=71 // pred_region
          %489 = dma.done [#allocation12], 3840
        $region84: #{tpu_custom_call.1} parent=71 // pred_fallthru
          _
        %p490 = scmp.lt.s32.totalorder %s42, 1
        %s491 = scalar_select %p490, %s42, 1
        %s492 = smul.addr %s491, 2
        %s493 = smul.addr %s492, 4
        %s494 = scalar_lea.vmem %s2, %s493
        %p495 = pneg %p71
        %p496 = pneg %p68
        %p497 = scmp.lt.s32.totalorder %s42, 1
        %s498 = scalar_select %p497, %s42, 1
        %s499 = smul.addr %s498, 2
        %s500 = smul.addr %s499, 8
        %s501 = scalar_lea.vmem %s3, %s500
        %p502 = pneg %p97
        %p503 = pneg %p94
        %s504 = sand.u32 %s112, 1
        %s505 = scalar_lea.sflag [#allocation10], %s504
        %s506 = sand.u32 %s112, 1
        %s507 = smul.addr %s506, 4
        %s508 = scalar_lea.vmem [#allocation9], %s507
        %p509 = pneg %p125
        %p510 = pneg %p122
        %p511 = pneg %p146
        %p512 = pneg %p143
        %p513 = pneg %p167
        %p514 = pneg %p164
        %p515 = pneg %p188
        %p516 = pneg %p185
        %p517 = pneg %p209
        %p518 = pneg %p206
        %p519 = pneg %p230
        %p520 = pneg %p227
        %p521 = pneg %p251
        %p522 = pneg %p248
        %p523 = pneg %p272
        %p524 = pneg %p269
        %p525 = pneg %p293
        %p526 = pneg %p290
        %p527 = pneg %p314
        %p528 = pneg %p311
        %p529 = pneg %p335
        %p530 = pneg %p332
        %p531 = pneg %p361
        %p532 = pneg %p358
        %p533 = scmp.lt.s32.totalorder %s42, 1
        %s534 = scalar_select %p533, %s42, 1
        %s535 = smul.addr %s534, 2
        %s536 = smul.addr %s535, 8
        %s537 = scalar_lea.vmem %s15, %s536
        %p538 = scmp.lt.s32.totalorder %s42, 1
        %s539 = scalar_select %p538, %s42, 1
        %s540 = smul.addr %s539, 2
        %s541 = smul.addr %s540, 4
        %s542 = scalar_lea.vmem %s2, %s541
        %p543 = scmp.lt.s32.totalorder %s42, 1
        %s544 = scalar_select %p543, %s42, 1
        %s545 = smul.addr %s544, 2
        %s546 = smul.addr %s545, 8
        %s547 = scalar_lea.vmem %s3, %s546
        %p548 = scmp.lt.s32.totalorder %s42, 1
        %s549 = scalar_select %p548, %s42, 1
        %s550 = smul.addr %s549, 2
        %s551 = smul.addr %s550, 8
        %s552 = scalar_lea.vmem %s15, %s551
        %p554 = scmp.eq.s32.totalorder %s43, 0
        // Predicated region
        $region85: #{tpu_custom_call.1} parent=71 // pred_check
          %p555 = pneg %p554
        $region86: #{tpu_custom_call.1} parent=71 // pred_check_branch
          %557 = sbr.rel (%p555) target = $region88
        $region87: #{tpu_custom_call.1} parent=71 // pred_region
          %s558 = sld [smem:[#allocation7 + %s42]]
          %v559 = vlaneseq
          %v560 = vshrl.u32 %v559, 7
          %v561 = vadd.s32 %v560, 8
          %v562 = vstv %s558
          %vm563 = vcmp.lt.s32.totalorder %v560, %v562
          %vm564 = vcmp.lt.s32.totalorder %v561, %v562
          %v565 = vsel %vm563, 1, 0
          %v566 = vsel %vm564, 1, 0
          %v567 = vcvt.s32.f32 %v565
          %v568 = vcvt.s32.f32 %v566
          %vm569 = vcmask 7168
          %570 = vst.msk [vmem:[#allocation5] sm:$0xff] %vm569, %v567
          %571 = vst.msk [vmem:[#allocation5 + $0x8] sm:$0xff] %vm569, %v568
          %vm572 = vcmask 261120
          %573 = vst.msk [vmem:[#allocation4] sm:$0xff] %vm572, %v567
          %574 = vst.msk [vmem:[#allocation4 + $0x8] sm:$0xff] %vm572, %v568
          %v575 = vld [vmem:[%s542] sm:$0xf]
          %v576 = vld [vmem:[%s542 + $0x4] sm:$0xf]
          %v577 = vld [vmem:[%s5] sm:$0x3]
          %v578 = vld [vmem:[%s6] sm:$0x1]
          %v580 = vlaneseq
          %v581 = vshrl.u32 %v580, 7
          %v582 = vsub.s32 0, %v581
          %v583 = vrot.slane %v578, %v582
          %v587 = vunpack.c.l.b16 %v575
          %v588 = vunpack.c.l.b16 %v576
          %v589 = vpack.c.b16 %v588, %v587
          %vm590 = vcmask 31744
          %v592 = vsel %vm590, %v589, 0
          %vm594 = vcmask 1041408
          %v596 = vsel %vm594, %v577, 0
          %598 = vmatprep.subr.bf16.mxu0 0
          %599 = vmatpush1.bf16.msra.mxu0 %v596
          %600 = vmatprep.subr.bf16.mxu0 0
          %601 = vmatpush1.bf16.msra.mxu0 0
          %602 = vmatprep.subr.bf16.mxu0 0
          %603 = vmatpush1.bf16.msra.mxu0 0
          %604 = vmatprep.subr.bf16.mxu0 0
          %605 = vmatpush1.bf16.msra.mxu0 0
          %606 = vmatprep.subr.bf16.mxu0 0
          %607 = vmatpush1.bf16.msra.mxu0 0
          %608 = vmatprep.subr.bf16.mxu0 0
          %609 = vmatpush1.bf16.msra.mxu0 0
          %610 = vmatprep.subr.bf16.mxu0 0
          %611 = vmatpush1.bf16.msra.mxu0 0
          %612 = vmatprep.subr.bf16.mxu0 0
          %613 = vmatpush1.bf16.msra.mxu0 0
          %614 = vmatprep.subr.bf16.mxu0 0
          %615 = vmatpush1.bf16.msra.mxu0 0
          %616 = vmatprep.subr.bf16.mxu0 0
          %617 = vmatpush1.bf16.msra.mxu0 0
          %618 = vmatprep.subr.bf16.mxu0 0
          %619 = vmatpush1.bf16.msra.mxu0 0
          %620 = vmatprep.subr.bf16.mxu0 0
          %621 = vmatpush1.bf16.msra.mxu0 0
          %622 = vmatprep.subr.bf16.mxu0 0
          %623 = vmatpush1.bf16.msra.mxu0 0
          %624 = vmatprep.subr.bf16.mxu0 0
          %625 = vmatpush1.bf16.msra.mxu0 0
          %626 = vmatprep.subr.bf16.mxu0 0
          %627 = vmatpush1.bf16.msra.mxu0 0
          %628 = vmatprep.subr.bf16.mxu0 0
          %629 = vmatpush1.bf16.msra.mxu0 0
          %630 = vmatprep.mubr.bf16.mxu0 0
          %631 = vmatmul.mubr.bf16.gmra.mrb[0].mxu0 %v592
          %v632 = vpop.f32.mrb[0].mxu0
          %v633 = vadd.f32 %v583, %v632
          %v634 = vpop.f32.mrb[0].mxu0
          %v635 = vpop.f32.mrb[0].mxu0
          %v636 = vadd.f32 %v583, %v635
          %v637 = vpop.f32.mrb[0].mxu0
          %638 = vdwg.mxu0
          %v639 = vmul.f32 %v633, %v567
          %v640 = vmul.f32 %v636, %v568
          %641 = vst.msk [vmem:[#allocation2 + $0x8] sm:$0xff] %vm572, %v639
          %642 = vst.msk [vmem:[#allocation2 + $0x10] sm:$0xff] %vm572, %v640
          %643 = vst.msk [vmem:[#allocation3] sm:$0xff] %vm572, 0.0
          %644 = vst.msk [vmem:[#allocation3 + $0x8] sm:$0xff] %vm572, 0.0
          %645 = vst.msk [vmem:[#allocation2] sm:$0xff] %vm572, 0.0
          %646 = vst.msk [vmem:[#allocation2 + $0x18] sm:$0xff] %vm572, 0.0
        $region88: #{tpu_custom_call.1} parent=71 // pred_fallthru
          _
        %v647 = vld [vmem:[%s477] sm:$0xf]
        %s648 = sld [smem:[#allocation8 + %s43]]
        %s649 = smul.u32 %s648, 4294967294
        %s650 = sadd.s32 %s649, 8
        %s651 = scalar_lea.vmem [#allocation2], %s650
        %v652 = vld [vmem:[%s651] sm:$0xff]
        %v653 = vld [vmem:[%s651 + $0x8] sm:$0xff]
        %v654 = vpack.c.bf16 %v653, %v652
        %s655 = smul.u32 %s43, 5
        %s656 = smul.u32 %s655, 4
        %s657 = smul.addr %s656, 4
        %s658 = scalar_lea.vmem [#allocation11], %s657
        %v659 = vld [vmem:[%s658] sm:$0xf]
        %v660 = vld [vmem:[%s658 + $0x4] sm:$0xf]
        %v661 = vld [vmem:[%s658 + $0x8] sm:$0xf]
        %v662 = vld [vmem:[%s658 + $0xc] sm:$0xf]
        %s663 = smul.addr %s656, 4
        %s664 = scalar_lea.vmem [#allocation13], %s663
        %v665 = vld [vmem:[%s664] sm:$0xf]
        %v666 = vld [vmem:[%s664 + $0x4] sm:$0xf]
        %v667 = vld [vmem:[%s664 + $0x8] sm:$0xf]
        %v668 = vld [vmem:[%s664 + $0xc] sm:$0xf]
        %s669 = ssub.s32 8, %s648
        %s670 = scalar_lea.vmem [#allocation2], %s669
        %v671 = vld [vmem:[%s670] sm:$0xff]
        %v672 = vld [vmem:[%s670 + $0x8] sm:$0xff]
        %v673 = vpack.c.bf16 %v672, %v671
        %s674 = sadd.s32 %s655, 1
        %s675 = smul.u32 %s674, 4
        %s676 = smul.addr %s675, 4
        %s677 = scalar_lea.vmem [#allocation11], %s676
        %v678 = vld [vmem:[%s677] sm:$0xf]
        %v679 = vld [vmem:[%s677 + $0x4] sm:$0xf]
        %v680 = vld [vmem:[%s677 + $0x8] sm:$0xf]
        %v681 = vld [vmem:[%s677 + $0xc] sm:$0xf]
        %v686 = vunpack.c.l.b16 %v678
        %v687 = vunpack.c.l.b16 %v679
        %v688 = vunpack.c.l.b16 %v680
        %v689 = vunpack.c.l.b16 %v681
        %v690 = vpack.c.b16 %v687, %v686
        %v691 = vpack.c.b16 %v689, %v688
        %vm694 = vcmask 261120
        %v696 = vsel %vm694, %v673, 0
        %698 = vmatprep.subr.bf16.mxu0 0
        %699 = vmatpush1.bf16.msra.mxu0 %v690
        %700 = vmatprep.subr.bf16.mxu0 0
        %701 = vmatpush1.bf16.msra.mxu0 %v691
        %702 = vmatprep.subr.bf16.mxu0 0
        %703 = vmatpush1.bf16.msra.mxu0 0
        %704 = vmatprep.subr.bf16.mxu0 0
        %705 = vmatpush1.bf16.msra.mxu0 0
        %706 = vmatprep.subr.bf16.mxu0 0
        %707 = vmatpush1.bf16.msra.mxu0 0
        %708 = vmatprep.subr.bf16.mxu0 0
        %709 = vmatpush1.bf16.msra.mxu0 0
        %710 = vmatprep.subr.bf16.mxu0 0
        %711 = vmatpush1.bf16.msra.mxu0 0
        %712 = vmatprep.subr.bf16.mxu0 0
        %713 = vmatpush1.bf16.msra.mxu0 0
        %714 = vmatprep.subr.bf16.mxu0 0
        %715 = vmatpush1.bf16.msra.mxu0 0
        %716 = vmatprep.subr.bf16.mxu0 0
        %717 = vmatpush1.bf16.msra.mxu0 0
        %718 = vmatprep.subr.bf16.mxu0 0
        %719 = vmatpush1.bf16.msra.mxu0 0
        %720 = vmatprep.subr.bf16.mxu0 0
        %721 = vmatpush1.bf16.msra.mxu0 0
        %722 = vmatprep.subr.bf16.mxu0 0
        %723 = vmatpush1.bf16.msra.mxu0 0
        %724 = vmatprep.subr.bf16.mxu0 0
        %725 = vmatpush1.bf16.msra.mxu0 0
        %726 = vmatprep.subr.bf16.mxu0 0
        %727 = vmatpush1.bf16.msra.mxu0 0
        %728 = vmatprep.subr.bf16.mxu0 0
        %729 = vmatpush1.bf16.msra.mxu0 0
        %730 = vmatprep.mubr.bf16.mxu0 0
        %731 = vmatmul.mubr.bf16.gmra.mrb[0].mxu0 %v696
        %v732 = vpop.f32.mrb[0].mxu0
        %v733 = vadd.f32 0.0, %v732
        %v734 = vpop.f32.mrb[0].mxu0
        %v735 = vpop.f32.mrb[0].mxu0
        %v736 = vadd.f32 0.0, %v735
        %v737 = vpop.f32.mrb[0].mxu0
        %738 = vdwg.mxu0
        %v743 = vunpack.c.l.b16 %v659
        %v744 = vunpack.c.l.b16 %v660
        %v745 = vunpack.c.l.b16 %v661
        %v746 = vunpack.c.l.b16 %v662
        %v747 = vpack.c.b16 %v744, %v743
        %v748 = vpack.c.b16 %v746, %v745
        %v752 = vsel %vm694, %v654, 0
        %754 = vmatprep.subr.bf16.mxu0 0
        %755 = vmatpush1.bf16.msra.mxu0 %v747
        %756 = vmatprep.subr.bf16.mxu0 0
        %757 = vmatpush1.bf16.msra.mxu0 %v748
        %758 = vmatprep.subr.bf16.mxu0 0
        %759 = vmatpush1.bf16.msra.mxu0 0
        %760 = vmatprep.subr.bf16.mxu0 0
        %761 = vmatpush1.bf16.msra.mxu0 0
        %762 = vmatprep.subr.bf16.mxu0 0
        %763 = vmatpush1.bf16.msra.mxu0 0
        %764 = vmatprep.subr.bf16.mxu0 0
        %765 = vmatpush1.bf16.msra.mxu0 0
        %766 = vmatprep.subr.bf16.mxu0 0
        %767 = vmatpush1.bf16.msra.mxu0 0
        %768 = vmatprep.subr.bf16.mxu0 0
        %769 = vmatpush1.bf16.msra.mxu0 0
        %770 = vmatprep.subr.bf16.mxu0 0
        %771 = vmatpush1.bf16.msra.mxu0 0
        %772 = vmatprep.subr.bf16.mxu0 0
        %773 = vmatpush1.bf16.msra.mxu0 0
        %774 = vmatprep.subr.bf16.mxu0 0
        %775 = vmatpush1.bf16.msra.mxu0 0
        %776 = vmatprep.subr.bf16.mxu0 0
        %777 = vmatpush1.bf16.msra.mxu0 0
        %778 = vmatprep.subr.bf16.mxu0 0
        %779 = vmatpush1.bf16.msra.mxu0 0
        %780 = vmatprep.subr.bf16.mxu0 0
        %781 = vmatpush1.bf16.msra.mxu0 0
        %782 = vmatprep.subr.bf16.mxu0 0
        %783 = vmatpush1.bf16.msra.mxu0 0
        %784 = vmatprep.subr.bf16.mxu0 0
        %785 = vmatpush1.bf16.msra.mxu0 0
        %786 = vmatprep.mubr.bf16.mxu0 0
        %787 = vmatmul.mubr.bf16.gmra.mrb[0].mxu0 %v752
        %v788 = vpop.f32.mrb[0].mxu0
        %v789 = vadd.f32 %v733, %v788
        %v790 = vpop.f32.mrb[0].mxu0
        %v791 = vpop.f32.mrb[0].mxu0
        %v792 = vadd.f32 %v736, %v791
        %v793 = vpop.f32.mrb[0].mxu0
        %794 = vdwg.mxu0
        %s795 = smul.addr %s675, 4
        %s796 = scalar_lea.vmem [#allocation13], %s795
        %v797 = vld [vmem:[%s796] sm:$0xf]
        %v798 = vld [vmem:[%s796 + $0x4] sm:$0xf]
        %v799 = vld [vmem:[%s796 + $0x8] sm:$0xf]
        %v800 = vld [vmem:[%s796 + $0xc] sm:$0xf]
        %v805 = vunpack.c.l.b16 %v797
        %v806 = vunpack.c.l.b16 %v798
        %v807 = vunpack.c.l.b16 %v799
        %v808 = vunpack.c.l.b16 %v800
        %v809 = vpack.c.b16 %v806, %v805
        %v810 = vpack.c.b16 %v808, %v807
        %813 = vmatprep.subr.bf16.mxu0 0
        %814 = vmatpush1.bf16.msra.mxu0 %v809
        %815 = vmatprep.subr.bf16.mxu0 0
        %816 = vmatpush1.bf16.msra.mxu0 %v810
        %817 = vmatprep.subr.bf16.mxu0 0
        %818 = vmatpush1.bf16.msra.mxu0 0
        %819 = vmatprep.subr.bf16.mxu0 0
        %820 = vmatpush1.bf16.msra.mxu0 0
        %821 = vmatprep.subr.bf16.mxu0 0
        %822 = vmatpush1.bf16.msra.mxu0 0
        %823 = vmatprep.subr.bf16.mxu0 0
        %824 = vmatpush1.bf16.msra.mxu0 0
        %825 = vmatprep.subr.bf16.mxu0 0
        %826 = vmatpush1.bf16.msra.mxu0 0
        %827 = vmatprep.subr.bf16.mxu0 0
        %828 = vmatpush1.bf16.msra.mxu0 0
        %829 = vmatprep.subr.bf16.mxu0 0
        %830 = vmatpush1.bf16.msra.mxu0 0
        %831 = vmatprep.subr.bf16.mxu0 0
        %832 = vmatpush1.bf16.msra.mxu0 0
        %833 = vmatprep.subr.bf16.mxu0 0
        %834 = vmatpush1.bf16.msra.mxu0 0
        %835 = vmatprep.subr.bf16.mxu0 0
        %836 = vmatpush1.bf16.msra.mxu0 0
        %837 = vmatprep.subr.bf16.mxu0 0
        %838 = vmatpush1.bf16.msra.mxu0 0
        %839 = vmatprep.subr.bf16.mxu0 0
        %840 = vmatpush1.bf16.msra.mxu0 0
        %841 = vmatprep.subr.bf16.mxu0 0
        %842 = vmatpush1.bf16.msra.mxu0 0
        %843 = vmatprep.subr.bf16.mxu0 0
        %844 = vmatpush1.bf16.msra.mxu0 0
        %845 = vmatprep.mubr.bf16.mxu0 0
        %846 = vmatmul.mubr.bf16.gmra.mrb[0].mxu0 %v696
        %v847 = vpop.f32.mrb[0].mxu0
        %v848 = vadd.f32 0.0, %v847
        %v849 = vpop.f32.mrb[0].mxu0
        %v850 = vpop.f32.mrb[0].mxu0
        %v851 = vadd.f32 0.0, %v850
        %v852 = vpop.f32.mrb[0].mxu0
        %853 = vdwg.mxu0
        %v858 = vunpack.c.l.b16 %v665
        %v859 = vunpack.c.l.b16 %v666
        %v860 = vunpack.c.l.b16 %v667
        %v861 = vunpack.c.l.b16 %v668
        %v862 = vpack.c.b16 %v859, %v858
        %v863 = vpack.c.b16 %v861, %v860
        %866 = vmatprep.subr.bf16.mxu0 0
        %867 = vmatpush1.bf16.msra.mxu0 %v862
        %868 = vmatprep.subr.bf16.mxu0 0
        %869 = vmatpush1.bf16.msra.mxu0 %v863
        %870 = vmatprep.subr.bf16.mxu0 0
        %871 = vmatpush1.bf16.msra.mxu0 0
        %872 = vmatprep.subr.bf16.mxu0 0
        %873 = vmatpush1.bf16.msra.mxu0 0
        %874 = vmatprep.subr.bf16.mxu0 0
        %875 = vmatpush1.bf16.msra.mxu0 0
        %876 = vmatprep.subr.bf16.mxu0 0
        %877 = vmatpush1.bf16.msra.mxu0 0
        %878 = vmatprep.subr.bf16.mxu0 0
        %879 = vmatpush1.bf16.msra.mxu0 0
        %880 = vmatprep.subr.bf16.mxu0 0
        %881 = vmatpush1.bf16.msra.mxu0 0
        %882 = vmatprep.subr.bf16.mxu0 0
        %883 = vmatpush1.bf16.msra.mxu0 0
        %884 = vmatprep.subr.bf16.mxu0 0
        %885 = vmatpush1.bf16.msra.mxu0 0
        %886 = vmatprep.subr.bf16.mxu0 0
        %887 = vmatpush1.bf16.msra.mxu0 0
        %888 = vmatprep.subr.bf16.mxu0 0
        %889 = vmatpush1.bf16.msra.mxu0 0
        %890 = vmatprep.subr.bf16.mxu0 0
        %891 = vmatpush1.bf16.msra.mxu0 0
        %892 = vmatprep.subr.bf16.mxu0 0
        %893 = vmatpush1.bf16.msra.mxu0 0
        %894 = vmatprep.subr.bf16.mxu0 0
        %895 = vmatpush1.bf16.msra.mxu0 0
        %896 = vmatprep.subr.bf16.mxu0 0
        %897 = vmatpush1.bf16.msra.mxu0 0
        %898 = vmatprep.mubr.bf16.mxu0 0
        %899 = vmatmul.mubr.bf16.gmra.mrb[0].mxu0 %v752
        %v900 = vpop.f32.mrb[0].mxu0
        %v901 = vadd.f32 %v848, %v900
        %v902 = vpop.f32.mrb[0].mxu0
        %v903 = vpop.f32.mrb[0].mxu0
        %v904 = vadd.f32 %v851, %v903
        %v905 = vpop.f32.mrb[0].mxu0
        %906 = vdwg.mxu0
        %v907 = vld [vmem:[#allocation2 + $0x8] sm:$0xff]
        %v908 = vld [vmem:[#allocation2 + $0x10] sm:$0xff]
        %v909 = vpack.c.bf16 %v908, %v907
        %s910 = sadd.s32 %s655, 2
        %s911 = smul.u32 %s910, 4
        %s912 = smul.addr %s911, 4
        %s913 = scalar_lea.vmem [#allocation11], %s912
        %v914 = vld [vmem:[%s913] sm:$0xf]
        %v915 = vld [vmem:[%s913 + $0x4] sm:$0xf]
        %v916 = vld [vmem:[%s913 + $0x8] sm:$0xf]
        %v917 = vld [vmem:[%s913 + $0xc] sm:$0xf]
        %v922 = vunpack.c.l.b16 %v914
        %v923 = vunpack.c.l.b16 %v915
        %v924 = vunpack.c.l.b16 %v916
        %v925 = vunpack.c.l.b16 %v917
        %v926 = vpack.c.b16 %v923, %v922
        %v927 = vpack.c.b16 %v925, %v924
        %v931 = vsel %vm694, %v909, 0
        %933 = vmatprep.subr.bf16.mxu0 0
        %934 = vmatpush1.bf16.msra.mxu0 %v926
        %935 = vmatprep.subr.bf16.mxu0 0
        %936 = vmatpush1.bf16.msra.mxu0 %v927
        %937 = vmatprep.subr.bf16.mxu0 0
        %938 = vmatpush1.bf16.msra.mxu0 0
        %939 = vmatprep.subr.bf16.mxu0 0
        %940 = vmatpush1.bf16.msra.mxu0 0
        %941 = vmatprep.subr.bf16.mxu0 0
        %942 = vmatpush1.bf16.msra.mxu0 0
        %943 = vmatprep.subr.bf16.mxu0 0
        %944 = vmatpush1.bf16.msra.mxu0 0
        %945 = vmatprep.subr.bf16.mxu0 0
        %946 = vmatpush1.bf16.msra.mxu0 0
        %947 = vmatprep.subr.bf16.mxu0 0
        %948 = vmatpush1.bf16.msra.mxu0 0
        %949 = vmatprep.subr.bf16.mxu0 0
        %950 = vmatpush1.bf16.msra.mxu0 0
        %951 = vmatprep.subr.bf16.mxu0 0
        %952 = vmatpush1.bf16.msra.mxu0 0
        %953 = vmatprep.subr.bf16.mxu0 0
        %954 = vmatpush1.bf16.msra.mxu0 0
        %955 = vmatprep.subr.bf16.mxu0 0
        %956 = vmatpush1.bf16.msra.mxu0 0
        %957 = vmatprep.subr.bf16.mxu0 0
        %958 = vmatpush1.bf16.msra.mxu0 0
        %959 = vmatprep.subr.bf16.mxu0 0
        %960 = vmatpush1.bf16.msra.mxu0 0
        %961 = vmatprep.subr.bf16.mxu0 0
        %962 = vmatpush1.bf16.msra.mxu0 0
        %963 = vmatprep.subr.bf16.mxu0 0
        %964 = vmatpush1.bf16.msra.mxu0 0
        %965 = vmatprep.mubr.bf16.mxu0 0
        %966 = vmatmul.mubr.bf16.gmra.mrb[0].mxu0 %v931
        %v967 = vpop.f32.mrb[0].mxu0
        %v968 = vadd.f32 0.0, %v967
        %v969 = vpop.f32.mrb[0].mxu0
        %v970 = vpop.f32.mrb[0].mxu0
        %v971 = vadd.f32 0.0, %v970
        %v972 = vpop.f32.mrb[0].mxu0
        %973 = vdwg.mxu0
        %v974 = vadd.f32 %v789, %v968
        %v975 = vadd.f32 %v792, %v971
        %s976 = smul.addr %s911, 4
        %s977 = scalar_lea.vmem [#allocation13], %s976
        %v978 = vld [vmem:[%s977] sm:$0xf]
        %v979 = vld [vmem:[%s977 + $0x4] sm:$0xf]
        %v980 = vld [vmem:[%s977 + $0x8] sm:$0xf]
        %v981 = vld [vmem:[%s977 + $0xc] sm:$0xf]
        %v986 = vunpack.c.l.b16 %v978
        %v987 = vunpack.c.l.b16 %v979
        %v988 = vunpack.c.l.b16 %v980
        %v989 = vunpack.c.l.b16 %v981
        %v990 = vpack.c.b16 %v987, %v986
        %v991 = vpack.c.b16 %v989, %v988
        %994 = vmatprep.subr.bf16.mxu0 0
        %995 = vmatpush1.bf16.msra.mxu0 %v990
        %996 = vmatprep.subr.bf16.mxu0 0
        %997 = vmatpush1.bf16.msra.mxu0 %v991
        %998 = vmatprep.subr.bf16.mxu0 0
        %999 = vmatpush1.bf16.msra.mxu0 0
        %1000 = vmatprep.subr.bf16.mxu0 0
        %1001 = vmatpush1.bf16.msra.mxu0 0
        %1002 = vmatprep.subr.bf16.mxu0 0
        %1003 = vmatpush1.bf16.msra.mxu0 0
        %1004 = vmatprep.subr.bf16.mxu0 0
        %1005 = vmatpush1.bf16.msra.mxu0 0
        %1006 = vmatprep.subr.bf16.mxu0 0
        %1007 = vmatpush1.bf16.msra.mxu0 0
        %1008 = vmatprep.subr.bf16.mxu0 0
        %1009 = vmatpush1.bf16.msra.mxu0 0
        %1010 = vmatprep.subr.bf16.mxu0 0
        %1011 = vmatpush1.bf16.msra.mxu0 0
        %1012 = vmatprep.subr.bf16.mxu0 0
        %1013 = vmatpush1.bf16.msra.mxu0 0
        %1014 = vmatprep.subr.bf16.mxu0 0
        %1015 = vmatpush1.bf16.msra.mxu0 0
        %1016 = vmatprep.subr.bf16.mxu0 0
        %1017 = vmatpush1.bf16.msra.mxu0 0
        %1018 = vmatprep.subr.bf16.mxu0 0
        %1019 = vmatpush1.bf16.msra.mxu0 0
        %1020 = vmatprep.subr.bf16.mxu0 0
        %1021 = vmatpush1.bf16.msra.mxu0 0
        %1022 = vmatprep.subr.bf16.mxu0 0
        %1023 = vmatpush1.bf16.msra.mxu0 0
        %1024 = vmatprep.subr.bf16.mxu0 0
        %1025 = vmatpush1.bf16.msra.mxu0 0
        %1026 = vmatprep.mubr.bf16.mxu0 0
        %1027 = vmatmul.mubr.bf16.gmra.mrb[0].mxu0 %v931
        %v1028 = vpop.f32.mrb[0].mxu0
        %v1029 = vadd.f32 0.0, %v1028
        %v1030 = vpop.f32.mrb[0].mxu0
        %v1031 = vpop.f32.mrb[0].mxu0
        %v1032 = vadd.f32 0.0, %v1031
        %v1033 = vpop.f32.mrb[0].mxu0
        %1034 = vdwg.mxu0
        %v1035 = vadd.f32 %v901, %v1029
        %v1036 = vadd.f32 %v904, %v1032
        %s1037 = sadd.s32 %s648, 8
        %s1038 = scalar_lea.vmem [#allocation2], %s1037
        %v1039 = vld [vmem:[%s1038] sm:$0xff]
        %v1040 = vld [vmem:[%s1038 + $0x8] sm:$0xff]
        %v1041 = vpack.c.bf16 %v1040, %v1039
        %s1042 = sadd.s32 %s655, 3
        %s1043 = smul.u32 %s1042, 4
        %s1044 = smul.addr %s1043, 4
        %s1045 = scalar_lea.vmem [#allocation11], %s1044
        %v1046 = vld [vmem:[%s1045] sm:$0xf]
        %v1047 = vld [vmem:[%s1045 + $0x4] sm:$0xf]
        %v1048 = vld [vmem:[%s1045 + $0x8] sm:$0xf]
        %v1049 = vld [vmem:[%s1045 + $0xc] sm:$0xf]
        %v1054 = vunpack.c.l.b16 %v1046
        %v1055 = vunpack.c.l.b16 %v1047
        %v1056 = vunpack.c.l.b16 %v1048
        %v1057 = vunpack.c.l.b16 %v1049
        %v1058 = vpack.c.b16 %v1055, %v1054
        %v1059 = vpack.c.b16 %v1057, %v1056
        %v1063 = vsel %vm694, %v1041, 0
        %1065 = vmatprep.subr.bf16.mxu0 0
        %1066 = vmatpush1.bf16.msra.mxu0 %v1058
        %1067 = vmatprep.subr.bf16.mxu0 0
        %1068 = vmatpush1.bf16.msra.mxu0 %v1059
        %1069 = vmatprep.subr.bf16.mxu0 0
        %1070 = vmatpush1.bf16.msra.mxu0 0
        %1071 = vmatprep.subr.bf16.mxu0 0
        %1072 = vmatpush1.bf16.msra.mxu0 0
        %1073 = vmatprep.subr.bf16.mxu0 0
        %1074 = vmatpush1.bf16.msra.mxu0 0
        %1075 = vmatprep.subr.bf16.mxu0 0
        %1076 = vmatpush1.bf16.msra.mxu0 0
        %1077 = vmatprep.subr.bf16.mxu0 0
        %1078 = vmatpush1.bf16.msra.mxu0 0
        %1079 = vmatprep.subr.bf16.mxu0 0
        %1080 = vmatpush1.bf16.msra.mxu0 0
        %1081 = vmatprep.subr.bf16.mxu0 0
        %1082 = vmatpush1.bf16.msra.mxu0 0
        %1083 = vmatprep.subr.bf16.mxu0 0
        %1084 = vmatpush1.bf16.msra.mxu0 0
        %1085 = vmatprep.subr.bf16.mxu0 0
        %1086 = vmatpush1.bf16.msra.mxu0 0
        %1087 = vmatprep.subr.bf16.mxu0 0
        %1088 = vmatpush1.bf16.msra.mxu0 0
        %1089 = vmatprep.subr.bf16.mxu0 0
        %1090 = vmatpush1.bf16.msra.mxu0 0
        %1091 = vmatprep.subr.bf16.mxu0 0
        %1092 = vmatpush1.bf16.msra.mxu0 0
        %1093 = vmatprep.subr.bf16.mxu0 0
        %1094 = vmatpush1.bf16.msra.mxu0 0
        %1095 = vmatprep.subr.bf16.mxu0 0
        %1096 = vmatpush1.bf16.msra.mxu0 0
        %1097 = vmatprep.mubr.bf16.mxu0 0
        %1098 = vmatmul.mubr.bf16.gmra.mrb[0].mxu0 %v1063
        %v1099 = vpop.f32.mrb[0].mxu0
        %v1100 = vadd.f32 0.0, %v1099
        %v1101 = vpop.f32.mrb[0].mxu0
        %v1102 = vpop.f32.mrb[0].mxu0
        %v1103 = vadd.f32 0.0, %v1102
        %v1104 = vpop.f32.mrb[0].mxu0
        %1105 = vdwg.mxu0
        %v1106 = vadd.f32 %v974, %v1100
        %v1107 = vadd.f32 %v975, %v1103
        %s1108 = smul.addr %s1043, 4
        %s1109 = scalar_lea.vmem [#allocation13], %s1108
        %v1110 = vld [vmem:[%s1109] sm:$0xf]
        %v1111 = vld [vmem:[%s1109 + $0x4] sm:$0xf]
        %v1112 = vld [vmem:[%s1109 + $0x8] sm:$0xf]
        %v1113 = vld [vmem:[%s1109 + $0xc] sm:$0xf]
        %v1118 = vunpack.c.l.b16 %v1110
        %v1119 = vunpack.c.l.b16 %v1111
        %v1120 = vunpack.c.l.b16 %v1112
        %v1121 = vunpack.c.l.b16 %v1113
        %v1122 = vpack.c.b16 %v1119, %v1118
        %v1123 = vpack.c.b16 %v1121, %v1120
        %1126 = vmatprep.subr.bf16.mxu0 0
        %1127 = vmatpush1.bf16.msra.mxu0 %v1122
        %1128 = vmatprep.subr.bf16.mxu0 0
        %1129 = vmatpush1.bf16.msra.mxu0 %v1123
        %1130 = vmatprep.subr.bf16.mxu0 0
        %1131 = vmatpush1.bf16.msra.mxu0 0
        %1132 = vmatprep.subr.bf16.mxu0 0
        %1133 = vmatpush1.bf16.msra.mxu0 0
        %1134 = vmatprep.subr.bf16.mxu0 0
        %1135 = vmatpush1.bf16.msra.mxu0 0
        %1136 = vmatprep.subr.bf16.mxu0 0
        %1137 = vmatpush1.bf16.msra.mxu0 0
        %1138 = vmatprep.subr.bf16.mxu0 0
        %1139 = vmatpush1.bf16.msra.mxu0 0
        %1140 = vmatprep.subr.bf16.mxu0 0
        %1141 = vmatpush1.bf16.msra.mxu0 0
        %1142 = vmatprep.subr.bf16.mxu0 0
        %1143 = vmatpush1.bf16.msra.mxu0 0
        %1144 = vmatprep.subr.bf16.mxu0 0
        %1145 = vmatpush1.bf16.msra.mxu0 0
        %1146 = vmatprep.subr.bf16.mxu0 0
        %1147 = vmatpush1.bf16.msra.mxu0 0
        %1148 = vmatprep.subr.bf16.mxu0 0
        %1149 = vmatpush1.bf16.msra.mxu0 0
        %1150 = vmatprep.subr.bf16.mxu0 0
        %1151 = vmatpush1.bf16.msra.mxu0 0
        %1152 = vmatprep.subr.bf16.mxu0 0
        %1153 = vmatpush1.bf16.msra.mxu0 0
        %1154 = vmatprep.subr.bf16.mxu0 0
        %1155 = vmatpush1.bf16.msra.mxu0 0
        %1156 = vmatprep.subr.bf16.mxu0 0
        %1157 = vmatpush1.bf16.msra.mxu0 0
        %1158 = vmatprep.mubr.bf16.mxu0 0
        %1159 = vmatmul.mubr.bf16.gmra.mrb[0].mxu0 %v1063
        %v1160 = vpop.f32.mrb[0].mxu0
        %v1161 = vadd.f32 0.0, %v1160
        %v1162 = vpop.f32.mrb[0].mxu0
        %v1163 = vpop.f32.mrb[0].mxu0
        %v1164 = vadd.f32 0.0, %v1163
        %v1165 = vpop.f32.mrb[0].mxu0
        %1166 = vdwg.mxu0
        %v1167 = vadd.f32 %v1035, %v1161
        %v1168 = vadd.f32 %v1036, %v1164
        %s1169 = smul.u32 %s648, 2
        %s1170 = sadd.s32 %s1169, 8
        %s1171 = scalar_lea.vmem [#allocation2], %s1170
        %v1172 = vld [vmem:[%s1171] sm:$0xff]
        %v1173 = vld [vmem:[%s1171 + $0x8] sm:$0xff]
        %v1174 = vpack.c.bf16 %v1173, %v1172
        %s1175 = sadd.s32 %s655, 4
        %s1176 = smul.u32 %s1175, 4
        %s1177 = smul.addr %s1176, 4
        %s1178 = scalar_lea.vmem [#allocation11], %s1177
        %v1179 = vld [vmem:[%s1178] sm:$0xf]
        %v1180 = vld [vmem:[%s1178 + $0x4] sm:$0xf]
        %v1181 = vld [vmem:[%s1178 + $0x8] sm:$0xf]
        %v1182 = vld [vmem:[%s1178 + $0xc] sm:$0xf]
        %v1187 = vunpack.c.l.b16 %v1179
        %v1188 = vunpack.c.l.b16 %v1180
        %v1189 = vunpack.c.l.b16 %v1181
        %v1190 = vunpack.c.l.b16 %v1182
        %v1191 = vpack.c.b16 %v1188, %v1187
        %v1192 = vpack.c.b16 %v1190, %v1189
        %v1196 = vsel %vm694, %v1174, 0
        %1198 = vmatprep.subr.bf16.mxu0 0
        %1199 = vmatpush1.bf16.msra.mxu0 %v1191
        %1200 = vmatprep.subr.bf16.mxu0 0
        %1201 = vmatpush1.bf16.msra.mxu0 %v1192
        %1202 = vmatprep.subr.bf16.mxu0 0
        %1203 = vmatpush1.bf16.msra.mxu0 0
        %1204 = vmatprep.subr.bf16.mxu0 0
        %1205 = vmatpush1.bf16.msra.mxu0 0
        %1206 = vmatprep.subr.bf16.mxu0 0
        %1207 = vmatpush1.bf16.msra.mxu0 0
        %1208 = vmatprep.subr.bf16.mxu0 0
        %1209 = vmatpush1.bf16.msra.mxu0 0
        %1210 = vmatprep.subr.bf16.mxu0 0
        %1211 = vmatpush1.bf16.msra.mxu0 0
        %1212 = vmatprep.subr.bf16.mxu0 0
        %1213 = vmatpush1.bf16.msra.mxu0 0
        %1214 = vmatprep.subr.bf16.mxu0 0
        %1215 = vmatpush1.bf16.msra.mxu0 0
        %1216 = vmatprep.subr.bf16.mxu0 0
        %1217 = vmatpush1.bf16.msra.mxu0 0
        %1218 = vmatprep.subr.bf16.mxu0 0
        %1219 = vmatpush1.bf16.msra.mxu0 0
        %1220 = vmatprep.subr.bf16.mxu0 0
        %1221 = vmatpush1.bf16.msra.mxu0 0
        %1222 = vmatprep.subr.bf16.mxu0 0
        %1223 = vmatpush1.bf16.msra.mxu0 0
        %1224 = vmatprep.subr.bf16.mxu0 0
        %1225 = vmatpush1.bf16.msra.mxu0 0
        %1226 = vmatprep.subr.bf16.mxu0 0
        %1227 = vmatpush1.bf16.msra.mxu0 0
        %1228 = vmatprep.subr.bf16.mxu0 0
        %1229 = vmatpush1.bf16.msra.mxu0 0
        %1230 = vmatprep.mubr.bf16.mxu0 0
        %1231 = vmatmul.mubr.bf16.gmra.mrb[0].mxu0 %v1196
        %v1232 = vpop.f32.mrb[0].mxu0
        %v1233 = vadd.f32 0.0, %v1232
        %v1234 = vpop.f32.mrb[0].mxu0
        %v1235 = vpop.f32.mrb[0].mxu0
        %v1236 = vadd.f32 0.0, %v1235
        %v1237 = vpop.f32.mrb[0].mxu0
        %1238 = vdwg.mxu0
        %v1239 = vadd.f32 %v1106, %v1233
        %v1240 = vadd.f32 %v1107, %v1236
        %s1241 = smul.addr %s1176, 4
        %s1242 = scalar_lea.vmem [#allocation13], %s1241
        %v1243 = vld [vmem:[%s1242] sm:$0xf]
        %v1244 = vld [vmem:[%s1242 + $0x4] sm:$0xf]
        %v1245 = vld [vmem:[%s1242 + $0x8] sm:$0xf]
        %v1246 = vld [vmem:[%s1242 + $0xc] sm:$0xf]
        %v1251 = vunpack.c.l.b16 %v1243
        %v1252 = vunpack.c.l.b16 %v1244
        %v1253 = vunpack.c.l.b16 %v1245
        %v1254 = vunpack.c.l.b16 %v1246
        %v1255 = vpack.c.b16 %v1252, %v1251
        %v1256 = vpack.c.b16 %v1254, %v1253
        %1259 = vmatprep.subr.bf16.mxu0 0
        %1260 = vmatpush1.bf16.msra.mxu0 %v1255
        %1261 = vmatprep.subr.bf16.mxu0 0
        %1262 = vmatpush1.bf16.msra.mxu0 %v1256
        %1263 = vmatprep.subr.bf16.mxu0 0
        %1264 = vmatpush1.bf16.msra.mxu0 0
        %1265 = vmatprep.subr.bf16.mxu0 0
        %1266 = vmatpush1.bf16.msra.mxu0 0
        %1267 = vmatprep.subr.bf16.mxu0 0
        %1268 = vmatpush1.bf16.msra.mxu0 0
        %1269 = vmatprep.subr.bf16.mxu0 0
        %1270 = vmatpush1.bf16.msra.mxu0 0
        %1271 = vmatprep.subr.bf16.mxu0 0
        %1272 = vmatpush1.bf16.msra.mxu0 0
        %1273 = vmatprep.subr.bf16.mxu0 0
        %1274 = vmatpush1.bf16.msra.mxu0 0
        %1275 = vmatprep.subr.bf16.mxu0 0
        %1276 = vmatpush1.bf16.msra.mxu0 0
        %1277 = vmatprep.subr.bf16.mxu0 0
        %1278 = vmatpush1.bf16.msra.mxu0 0
        %1279 = vmatprep.subr.bf16.mxu0 0
        %1280 = vmatpush1.bf16.msra.mxu0 0
        %1281 = vmatprep.subr.bf16.mxu0 0
        %1282 = vmatpush1.bf16.msra.mxu0 0
        %1283 = vmatprep.subr.bf16.mxu0 0
        %1284 = vmatpush1.bf16.msra.mxu0 0
        %1285 = vmatprep.subr.bf16.mxu0 0
        %1286 = vmatpush1.bf16.msra.mxu0 0
        %1287 = vmatprep.subr.bf16.mxu0 0
        %1288 = vmatpush1.bf16.msra.mxu0 0
        %1289 = vmatprep.subr.bf16.mxu0 0
        %1290 = vmatpush1.bf16.msra.mxu0 0
        %1291 = vmatprep.mubr.bf16.mxu0 0
        %1292 = vmatmul.mubr.bf16.gmra.mrb[0].mxu0 %v1196
        %v1293 = vpop.f32.mrb[0].mxu0
        %v1294 = vadd.f32 0.0, %v1293
        %v1295 = vpop.f32.mrb[0].mxu0
        %v1296 = vpop.f32.mrb[0].mxu0
        %v1297 = vadd.f32 0.0, %v1296
        %v1298 = vpop.f32.mrb[0].mxu0
        %1299 = vdwg.mxu0
        %v1300 = vadd.f32 %v1167, %v1294
        %v1301 = vadd.f32 %v1168, %v1297
        %v1302 = vlaneseq
        %v1303 = vshrl.u32 %v1302, 7
        %v1304 = vsub.s32 0, %v1303
        %v1305 = vrot.slane %v647, %v1304
        %v1306 = vadd.f32 %v1239, %v1305
        %v1307 = vadd.f32 %v1240, %v1305
        %v1308 = vlaneseq
        %v1309 = vshrl.u32 %v1308, 7
        %v1310 = vsub.s32 1, %v1309
        %v1311 = vrot.slane %v647, %v1310
        %v1312 = vadd.f32 %v1300, %v1311
        %v1313 = vadd.f32 %v1301, %v1311
        %v1314 = vtanh.pop %v1306
        %v1315 = vtanh.pop %v1307
        %v1316 = vmul.f32 %v1312, 0.5
        %v1317 = vmul.f32 %v1313, 0.5
        %v1318 = vtanh.pop %v1316
        %v1319 = vtanh.pop %v1317
        %v1320 = vmul.f32 %v1318, 0.5
        %v1321 = vmul.f32 %v1319, 0.5
        %v1322 = vadd.f32 %v1320, 0.5
        %v1323 = vadd.f32 %v1321, 0.5
        %v1324 = vmul.f32 %v1314, %v1322
        %v1325 = vmul.f32 %v1315, %v1323
        %v1326 = vpack.c.bf16 %v1325, %v1324
        %s1327 = smul.u32 %s43, 4
        %s1328 = smul.addr %s1327, 4
        %s1329 = scalar_lea.vmem %s9, %s1328
        %v1330 = vld [vmem:[%s1329] sm:$0xf]
        %v1331 = vld [vmem:[%s1329 + $0x4] sm:$0xf]
        %v1332 = vld [vmem:[%s1329 + $0x8] sm:$0xf]
        %v1333 = vld [vmem:[%s1329 + $0xc] sm:$0xf]
        %v1334 = vlaneseq
        %v1335 = vshrl.u32 %v1334, 7
        %v1336 = vsub.s32 2, %v1335
        %v1337 = vrot.slane %v647, %v1336
        %v1342 = vunpack.c.l.b16 %v1330
        %v1343 = vunpack.c.l.b16 %v1331
        %v1344 = vunpack.c.l.b16 %v1332
        %v1345 = vunpack.c.l.b16 %v1333
        %v1346 = vpack.c.b16 %v1343, %v1342
        %v1347 = vpack.c.b16 %v1345, %v1344
        %v1351 = vsel %vm694, %v1326, 0
        %1353 = vmatprep.subr.bf16.mxu0 0
        %1354 = vmatpush1.bf16.msra.mxu0 %v1346
        %1355 = vmatprep.subr.bf16.mxu0 0
        %1356 = vmatpush1.bf16.msra.mxu0 %v1347
        %1357 = vmatprep.subr.bf16.mxu0 0
        %1358 = vmatpush1.bf16.msra.mxu0 0
        %1359 = vmatprep.subr.bf16.mxu0 0
        %1360 = vmatpush1.bf16.msra.mxu0 0
        %1361 = vmatprep.subr.bf16.mxu0 0
        %1362 = vmatpush1.bf16.msra.mxu0 0
        %1363 = vmatprep.subr.bf16.mxu0 0
        %1364 = vmatpush1.bf16.msra.mxu0 0
        %1365 = vmatprep.subr.bf16.mxu0 0
        %1366 = vmatpush1.bf16.msra.mxu0 0
        %1367 = vmatprep.subr.bf16.mxu0 0
        %1368 = vmatpush1.bf16.msra.mxu0 0
        %1369 = vmatprep.subr.bf16.mxu0 0
        %1370 = vmatpush1.bf16.msra.mxu0 0
        %1371 = vmatprep.subr.bf16.mxu0 0
        %1372 = vmatpush1.bf16.msra.mxu0 0
        %1373 = vmatprep.subr.bf16.mxu0 0
        %1374 = vmatpush1.bf16.msra.mxu0 0
        %1375 = vmatprep.subr.bf16.mxu0 0
        %1376 = vmatpush1.bf16.msra.mxu0 0
        %1377 = vmatprep.subr.bf16.mxu0 0
        %1378 = vmatpush1.bf16.msra.mxu0 0
        %1379 = vmatprep.subr.bf16.mxu0 0
        %1380 = vmatpush1.bf16.msra.mxu0 0
        %1381 = vmatprep.subr.bf16.mxu0 0
        %1382 = vmatpush1.bf16.msra.mxu0 0
        %1383 = vmatprep.subr.bf16.mxu0 0
        %1384 = vmatpush1.bf16.msra.mxu0 0
        %1385 = vmatprep.mubr.bf16.mxu0 0
        %1386 = vmatmul.mubr.bf16.gmra.mrb[0].mxu0 %v1351
        %v1387 = vpop.f32.mrb[0].mxu0
        %v1388 = vadd.f32 %v1337, %v1387
        %v1389 = vpop.f32.mrb[0].mxu0
        %v1390 = vpop.f32.mrb[0].mxu0
        %v1391 = vadd.f32 %v1337, %v1390
        %v1392 = vpop.f32.mrb[0].mxu0
        %1393 = vdwg.mxu0
        %s1394 = smul.addr %s1327, 4
        %s1395 = scalar_lea.vmem %s10, %s1394
        %v1396 = vld [vmem:[%s1395] sm:$0xf]
        %v1397 = vld [vmem:[%s1395 + $0x4] sm:$0xf]
        %v1398 = vld [vmem:[%s1395 + $0x8] sm:$0xf]
        %v1399 = vld [vmem:[%s1395 + $0xc] sm:$0xf]
        %v1400 = vlaneseq
        %v1401 = vshrl.u32 %v1400, 7
        %v1402 = vsub.s32 3, %v1401
        %v1403 = vrot.slane %v647, %v1402
        %v1408 = vunpack.c.l.b16 %v1396
        %v1409 = vunpack.c.l.b16 %v1397
        %v1410 = vunpack.c.l.b16 %v1398
        %v1411 = vunpack.c.l.b16 %v1399
        %v1412 = vpack.c.b16 %v1409, %v1408
        %v1413 = vpack.c.b16 %v1411, %v1410
        %1416 = vmatprep.subr.bf16.mxu0 0
        %1417 = vmatpush1.bf16.msra.mxu0 %v1412
        %1418 = vmatprep.subr.bf16.mxu0 0
        %1419 = vmatpush1.bf16.msra.mxu0 %v1413
        %1420 = vmatprep.subr.bf16.mxu0 0
        %1421 = vmatpush1.bf16.msra.mxu0 0
        %1422 = vmatprep.subr.bf16.mxu0 0
        %1423 = vmatpush1.bf16.msra.mxu0 0
        %1424 = vmatprep.subr.bf16.mxu0 0
        %1425 = vmatpush1.bf16.msra.mxu0 0
        %1426 = vmatprep.subr.bf16.mxu0 0
        %1427 = vmatpush1.bf16.msra.mxu0 0
        %1428 = vmatprep.subr.bf16.mxu0 0
        %1429 = vmatpush1.bf16.msra.mxu0 0
        %1430 = vmatprep.subr.bf16.mxu0 0
        %1431 = vmatpush1.bf16.msra.mxu0 0
        %1432 = vmatprep.subr.bf16.mxu0 0
        %1433 = vmatpush1.bf16.msra.mxu0 0
        %1434 = vmatprep.subr.bf16.mxu0 0
        %1435 = vmatpush1.bf16.msra.mxu0 0
        %1436 = vmatprep.subr.bf16.mxu0 0
        %1437 = vmatpush1.bf16.msra.mxu0 0
        %1438 = vmatprep.subr.bf16.mxu0 0
        %1439 = vmatpush1.bf16.msra.mxu0 0
        %1440 = vmatprep.subr.bf16.mxu0 0
        %1441 = vmatpush1.bf16.msra.mxu0 0
        %1442 = vmatprep.subr.bf16.mxu0 0
        %1443 = vmatpush1.bf16.msra.mxu0 0
        %1444 = vmatprep.subr.bf16.mxu0 0
        %1445 = vmatpush1.bf16.msra.mxu0 0
        %1446 = vmatprep.subr.bf16.mxu0 0
        %1447 = vmatpush1.bf16.msra.mxu0 0
        %1448 = vmatprep.mubr.bf16.mxu0 0
        %1449 = vmatmul.mubr.bf16.gmra.mrb[0].mxu0 %v1351
        %v1450 = vpop.f32.mrb[0].mxu0
        %v1451 = vadd.f32 %v1403, %v1450
        %v1452 = vpop.f32.mrb[0].mxu0
        %v1453 = vpop.f32.mrb[0].mxu0
        %v1454 = vadd.f32 %v1403, %v1453
        %v1455 = vpop.f32.mrb[0].mxu0
        %1456 = vdwg.mxu0
        %v1457 = vadd.f32 %v907, %v1388
        %v1458 = vadd.f32 %v908, %v1391
        %v1459 = vld [vmem:[#allocation4] sm:$0xff]
        %v1460 = vld [vmem:[#allocation4 + $0x8] sm:$0xff]
        %v1461 = vmul.f32 %v1457, %v1459
        %v1462 = vmul.f32 %v1458, %v1460
        %1463 = vst.msk [vmem:[#allocation2 + $0x8] sm:$0xff] %vm694, %v1461
        %1464 = vst.msk [vmem:[#allocation2 + $0x10] sm:$0xff] %vm694, %v1462
        %v1465 = vld [vmem:[#allocation3] sm:$0xff]
        %v1466 = vld [vmem:[#allocation3 + $0x8] sm:$0xff]
        %v1467 = vadd.f32 %v1465, %v1451
        %v1468 = vadd.f32 %v1466, %v1454
        %1469 = vst.msk [vmem:[#allocation3] sm:$0xff] %vm694, %v1467
        %1470 = vst.msk [vmem:[#allocation3 + $0x8] sm:$0xff] %vm694, %v1468
        %p1471 = scmp.eq.s32.totalorder %s43, 2
        // Predicated region
        $region89: #{tpu_custom_call.1} parent=71 // pred_check
          %p1472 = pneg %p1471
        $region90: #{tpu_custom_call.1} parent=71 // pred_check_branch
          %1474 = sbr.rel (%p1472) target = $region92
        $region91: #{tpu_custom_call.1} parent=71 // pred_region
          %v1475 = vld [vmem:[#allocation5] sm:$0xff]
          %v1476 = vld [vmem:[#allocation5 + $0x8] sm:$0xff]
          %v1477 = vld [vmem:[#allocation3] sm:$0xff]
          %v1478 = vld [vmem:[#allocation3 + $0x8] sm:$0xff]
          %v1479 = vld [vmem:[#allocation4] sm:$0xff]
          %v1480 = vld [vmem:[#allocation4 + $0x8] sm:$0xff]
          %v1481 = vmul.f32 %v1477, %v1479
          %v1482 = vmul.f32 %v1478, %v1480
          %v1483 = vpack.c.bf16 %v1482, %v1481
          %v1484 = vld [vmem:[%s11] sm:$0xf]
          %v1485 = vld [vmem:[%s11 + $0x4] sm:$0xf]
          %v1486 = vld [vmem:[%s11 + $0x8] sm:$0xf]
          %v1487 = vld [vmem:[%s11 + $0xc] sm:$0xf]
          %v1488 = vld [vmem:[%s12] sm:$0x1]
          %v1490 = vlaneseq
          %v1491 = vshrl.u32 %v1490, 7
          %v1492 = vsub.s32 0, %v1491
          %v1493 = vrot.slane %v1488, %v1492
          %v1499 = vunpack.c.l.b16 %v1484
          %v1500 = vunpack.c.l.b16 %v1485
          %v1501 = vunpack.c.l.b16 %v1486
          %v1502 = vunpack.c.l.b16 %v1487
          %v1503 = vpack.c.b16 %v1500, %v1499
          %v1504 = vpack.c.b16 %v1502, %v1501
          %v1508 = vsel %vm694, %v1483, 0
          %1510 = vmatprep.subr.bf16.mxu0 0
          %1511 = vmatpush1.bf16.msra.mxu0 %v1503
          %1512 = vmatprep.subr.bf16.mxu0 0
          %1513 = vmatpush1.bf16.msra.mxu0 %v1504
          %1514 = vmatprep.subr.bf16.mxu0 0
          %1515 = vmatpush1.bf16.msra.mxu0 0
          %1516 = vmatprep.subr.bf16.mxu0 0
          %1517 = vmatpush1.bf16.msra.mxu0 0
          %1518 = vmatprep.subr.bf16.mxu0 0
          %1519 = vmatpush1.bf16.msra.mxu0 0
          %1520 = vmatprep.subr.bf16.mxu0 0
          %1521 = vmatpush1.bf16.msra.mxu0 0
          %1522 = vmatprep.subr.bf16.mxu0 0
          %1523 = vmatpush1.bf16.msra.mxu0 0
          %1524 = vmatprep.subr.bf16.mxu0 0
          %1525 = vmatpush1.bf16.msra.mxu0 0
          %1526 = vmatprep.subr.bf16.mxu0 0
          %1527 = vmatpush1.bf16.msra.mxu0 0
          %1528 = vmatprep.subr.bf16.mxu0 0
          %1529 = vmatpush1.bf16.msra.mxu0 0
          %1530 = vmatprep.subr.bf16.mxu0 0
          %1531 = vmatpush1.bf16.msra.mxu0 0
          %1532 = vmatprep.subr.bf16.mxu0 0
          %1533 = vmatpush1.bf16.msra.mxu0 0
          %1534 = vmatprep.subr.bf16.mxu0 0
          %1535 = vmatpush1.bf16.msra.mxu0 0
          %1536 = vmatprep.subr.bf16.mxu0 0
          %1537 = vmatpush1.bf16.msra.mxu0 0
          %1538 = vmatprep.subr.bf16.mxu0 0
          %1539 = vmatpush1.bf16.msra.mxu0 0
          %1540 = vmatprep.subr.bf16.mxu0 0
          %1541 = vmatpush1.bf16.msra.mxu0 0
          %1542 = vmatprep.mubr.bf16.mxu0 0
          %1543 = vmatmul.mubr.bf16.gmra.mrb[0].mxu0 %v1508
          %v1544 = vpop.f32.mrb[0].mxu0
          %v1545 = vadd.f32 %v1493, %v1544
          %v1546 = vpop.f32.mrb[0].mxu0
          %v1547 = vpop.f32.mrb[0].mxu0
          %v1548 = vadd.f32 %v1493, %v1547
          %v1549 = vpop.f32.mrb[0].mxu0
          %1550 = vdwg.mxu0
          %1552 = vset.pattern.permute.xlu0 0
          %1553 = vperm.xlu0 %1552, %v1475
          %v1554 = vpop.permute.xlu0 %1553
          %1557 = vset.pattern.permute.xlu0 0
          %1558 = vperm.xlu0 %1557, %v1476
          %v1559 = vpop.permute.xlu0 %1558
          %v1561 = vmul.f32 %v1545, %v1554
          %v1562 = vmul.f32 %v1548, %v1559
          %v1563 = vld [vmem:[%s13] sm:$0xf]
          %v1564 = vld [vmem:[%s13 + $0x4] sm:$0xf]
          %v1565 = vld [vmem:[%s13 + $0x8] sm:$0xf]
          %v1566 = vld [vmem:[%s13 + $0xc] sm:$0xf]
          %v1567 = vld [vmem:[%s14] sm:$0x1]
          %v1569 = vlaneseq
          %v1570 = vshrl.u32 %v1569, 7
          %v1571 = vsub.s32 0, %v1570
          %v1572 = vrot.slane %v1567, %v1571
          %v1578 = vunpack.c.l.b16 %v1563
          %v1579 = vunpack.c.l.b16 %v1564
          %v1580 = vunpack.c.l.b16 %v1565
          %v1581 = vunpack.c.l.b16 %v1566
          %v1582 = vpack.c.b16 %v1579, %v1578
          %v1583 = vpack.c.b16 %v1581, %v1580
          %1586 = vmatprep.subr.bf16.mxu0 0
          %1587 = vmatpush1.bf16.msra.mxu0 %v1582
          %1588 = vmatprep.subr.bf16.mxu0 0
          %1589 = vmatpush1.bf16.msra.mxu0 %v1583
          %1590 = vmatprep.subr.bf16.mxu0 0
          %1591 = vmatpush1.bf16.msra.mxu0 0
          %1592 = vmatprep.subr.bf16.mxu0 0
          %1593 = vmatpush1.bf16.msra.mxu0 0
          %1594 = vmatprep.subr.bf16.mxu0 0
          %1595 = vmatpush1.bf16.msra.mxu0 0
          %1596 = vmatprep.subr.bf16.mxu0 0
          %1597 = vmatpush1.bf16.msra.mxu0 0
          %1598 = vmatprep.subr.bf16.mxu0 0
          %1599 = vmatpush1.bf16.msra.mxu0 0
          %1600 = vmatprep.subr.bf16.mxu0 0
          %1601 = vmatpush1.bf16.msra.mxu0 0
          %1602 = vmatprep.subr.bf16.mxu0 0
          %1603 = vmatpush1.bf16.msra.mxu0 0
          %1604 = vmatprep.subr.bf16.mxu0 0
          %1605 = vmatpush1.bf16.msra.mxu0 0
          %1606 = vmatprep.subr.bf16.mxu0 0
          %1607 = vmatpush1.bf16.msra.mxu0 0
          %1608 = vmatprep.subr.bf16.mxu0 0
          %1609 = vmatpush1.bf16.msra.mxu0 0
          %1610 = vmatprep.subr.bf16.mxu0 0
          %1611 = vmatpush1.bf16.msra.mxu0 0
          %1612 = vmatprep.subr.bf16.mxu0 0
          %1613 = vmatpush1.bf16.msra.mxu0 0
          %1614 = vmatprep.subr.bf16.mxu0 0
          %1615 = vmatpush1.bf16.msra.mxu0 0
          %1616 = vmatprep.subr.bf16.mxu0 0
          %1617 = vmatpush1.bf16.msra.mxu0 0
          %1618 = vmatprep.mubr.bf16.mxu0 0
          %1619 = vmatmul.mubr.bf16.gmra.mrb[0].mxu0 %v1508
          %v1620 = vpop.f32.mrb[0].mxu0
          %v1621 = vadd.f32 %v1572, %v1620
          %v1622 = vpop.f32.mrb[0].mxu0
          %v1623 = vpop.f32.mrb[0].mxu0
          %v1624 = vadd.f32 %v1572, %v1623
          %v1625 = vpop.f32.mrb[0].mxu0
          %1626 = vdwg.mxu0
          %v1627 = vmul.f32 %v1621, %v1554
          %v1628 = vmul.f32 %v1624, %v1559
          %v1629 = vld [vmem:[%s547] sm:$0xff]
          %v1630 = vld [vmem:[%s547 + $0x8] sm:$0xff]
          %v1631 = vmul.f32 %v1627, 1.442695
          %v1632 = vpow.pop %v1631
          %v1633 = vmul.f32 %v1628, 1.442695
          %v1634 = vpow.pop %v1633
          %v1635 = vmul.f32 %v1629, %v1632
          %v1636 = vmul.f32 %v1630, %v1634
          %v1637 = vadd.f32 %v1561, %v1635
          %v1638 = vadd.f32 %v1562, %v1636
          %v1639 = vmul.f32 %v1637, %v1554
          %v1640 = vmul.f32 %v1638, %v1559
          %1643 = vrot.lane.b32.xlu0 %v1627, 4
          %v1644 = vpop.permute.xlu0 %1643
          %1645 = vrot.lane.b32.xlu0 %v1628, 4
          %v1646 = vpop.permute.xlu0 %1645
          %1651 = vrot.lane.b32.xlu0 %v1639, 8
          %v1652 = vpop.permute.xlu0 %1651
          %1653 = vrot.lane.b32.xlu0 %v1640, 8
          %v1654 = vpop.permute.xlu0 %1653
          %vm1657 = vcmask 31744
          %v1658 = vsel %vm1657, %v1561, %v1644
          %v1659 = vsel %vm1657, %v1562, %v1646
          %vm1660 = vcmask 64512
          %v1661 = vsel %vm1660, %v1658, %v1652
          %v1662 = vsel %vm1660, %v1659, %v1654
          %vm1663 = vcmask 97280
          %1664 = vst.msk [vmem:[%s552] sm:$0xff] %vm1663, %v1661
          %1665 = vst.msk [vmem:[%s552 + $0x8] sm:$0xff] %vm1663, %v1662
        $region92: #{tpu_custom_call.1} parent=71 // pred_fallthru
          _
        %p1666 = scmp.lt.s32.totalorder %s42, 1
        %s1667 = scalar_select %p1666, %s42, 1
        %s1668 = smul.addr %s1667, 2
        %s1669 = smul.addr %s1668, 8
        %s1670 = scalar_lea.vmem %s15, %s1669
        // Predicated region
        $region93: #{tpu_custom_call.1} parent=71 // pred_check
          %p1671 = pneg %p358
        $region94: #{tpu_custom_call.1} parent=71 // pred_check_branch
          %1673 = sbr.rel (%p1671) target = $region96
        $region95: #{tpu_custom_call.1} parent=71 // pred_region
          _
        $region96: #{tpu_custom_call.1} parent=71 // pred_fallthru
          _
      $region72: #{tpu_custom_call.1} parent=5 // pred_fallthru
        _
      %p1674 = scmp.le.s32.totalorder 2, %s33
      // Predicated region
      $region97: #{tpu_custom_call.1} parent=5 // pred_check
        %p1675 = pneg %p1674
      $region98: #{tpu_custom_call.1} parent=5 // pred_check_branch
        %1677 = sbr.rel (%p1675) target = $region100
      $region99: #{tpu_custom_call.1} parent=5 // pred_region
        %s1678 = ssub.s32 %s33, 2
        // Predicated region
        $region101: #{tpu_custom_call.1} parent=99 // pred_check
          %p1679 = pneg %p364
        $region102: #{tpu_custom_call.1} parent=99 // pred_check_branch
          %1681 = sbr.rel (%p1679) target = $region104
        $region103: #{tpu_custom_call.1} parent=99 // pred_region
          %p1682 = scmp.lt.s32.totalorder %s44, 1
          %s1683 = scalar_select %p1682, %s44, 1
          %s1684 = smul.addr %s1683, 2
          %s1685 = smul.addr %s1684, 8
          %s1686 = scalar_lea.vmem %s15, %s1685
        $region104: #{tpu_custom_call.1} parent=99 // pred_fallthru
          _
      $region100: #{tpu_custom_call.1} parent=5 // pred_fallthru
        _
    $region6: #{tpu_custom_call.1} parent=1 // loop_footer
      %s37 = sadd.s32 1, %s33
    $region7: #{tpu_custom_call.1} parent=1 // loop_footer_branch
      %32 = sbr.rel target = $region3
    $region8: #{tpu_custom_call.1} parent=1 // loop_exit
      _
    %1687 = vsyncpa [#allocation10], 1
    %s1688 = scalar_lea.sflag [#allocation10], 1
    %1689 = vsyncpa %s1688, 1
    %1690 = vsyncpa [#allocation12], 1

</llo_original>
